<compile_context>
chip_gen: v7x
topology: tpu7x:2x2x1
jax: 0.10.0
libtpu: 0.0.40
codegen_flags: <defaults>
</compile_context>

<pallas_src>
import functools

import jax
import jax.numpy as jnp
from jax.experimental import pallas as pl
from jax.experimental.pallas import tpu as pltpu  # noqa: F401  (TPU backend assumed)


# ----------------------------------------------------------------------------
# Pallas kernels (whole-operand, VMEM-resident; no grid -> no pipeline overhead)
# ----------------------------------------------------------------------------
def _gemm_bias_relu_kernel(x_ref, w_ref, b_ref, o_ref, *, scale):
    """One conv layer as an im2col GEMM: o = relu((scale * x) @ w + b)."""
    x = x_ref[...]
    if scale is not None:                      # static Python branch / constant
        x = x * scale
    acc = jnp.dot(x, w_ref[...], preferred_element_type=jnp.float32) + b_ref[...]
    o_ref[...] = jnp.maximum(acc, 0.0).astype(o_ref.dtype)


def _head_kernel(h_ref, fcw_ref, fcb_ref, g_ref, bt_ref, a1_ref, a2_ref,
                 w0e1_ref, w0a1_ref, w0e2_ref, w0a2_ref, w0e3_ref, b0_ref,
                 w1_ref, b1_ref, w2_ref, b2_ref, o_ref, *, eps):
    """Fused encoder head + specific MLP.

    h_ref holds the flattened conv features of [obs1; obs2; obs3] stacked on
    the row axis (3B rows).  Computes tanh(LayerNorm(h @ Wfc + bfc)), splits
    the rows back into e1/e2/e3 and evaluates
        Linear -> ReLU -> Linear -> ReLU -> Linear
    on the (implicit) concat [e1, act1, e2, act2, e3] via partial dots, so the
    (3F + 2A)-wide concat never materialises.
    """
    f32 = jnp.float32
    h = jnp.dot(h_ref[...], fcw_ref[...], preferred_element_type=f32) + fcb_ref[...]
    mean = jnp.mean(h, axis=-1, keepdims=True)
    var = jnp.mean((h - mean) ** 2, axis=-1, keepdims=True)
    e = jnp.tanh((h - mean) * jax.lax.rsqrt(var + eps) * g_ref[...] + bt_ref[...])

    B = a1_ref.shape[0]                        # static
    e1, e2, e3 = e[0:B], e[B:2 * B], e[2 * B:3 * B]

    z = (jnp.dot(e1, w0e1_ref[...], preferred_element_type=f32)
         + jnp.dot(a1_ref[...], w0a1_ref[...], preferred_element_type=f32)
         + jnp.dot(e2, w0e2_ref[...], preferred_element_type=f32)
         + jnp.dot(a2_ref[...], w0a2_ref[...], preferred_element_type=f32)
         + jnp.dot(e3, w0e3_ref[...], preferred_element_type=f32)
         + b0_ref[...])
    z = jnp.maximum(z, 0.0)
    z = jnp.maximum(jnp.dot(z, w1_ref[...], preferred_element_type=f32) + b1_ref[...], 0.0)
    z = jnp.dot(z, w2_ref[...], preferred_element_type=f32) + b2_ref[...]
    o_ref[...] = z.astype(o_ref.dtype)


# ----------------------------------------------------------------------------
# Pallas wrappers
# ----------------------------------------------------------------------------
def gemm_bias_relu(x, w, b, scale=None):
    M, _ = x.shape
    N = w.shape[1]
    kern = functools.partial(_gemm_bias_relu_kernel, scale=scale)
    return pl.pallas_call(
        kern,
        out_shape=jax.ShapeDtypeStruct((M, N), jnp.float32),
    )(x, w, b)


def head_forward(h_flat, act1, act2, ep, sp, eps=1e-5):
    B = act1.shape[0]
    out_dim = sp["l2_w"].shape[1]
    kern = functools.partial(_head_kernel, eps=eps)
    return pl.pallas_call(
        kern,
        out_shape=jax.ShapeDtypeStruct((B, out_dim), jnp.float32),
    )(h_flat, ep["fc_w"], ep["fc_b"], ep["ln_g"], ep["ln_b"],
      act1, act2,
      sp["w0_e1"], sp["w0_a1"], sp["w0_e2"], sp["w0_a2"], sp["w0_e3"], sp["l0_b"],
      sp["l1_w"], sp["l1_b"], sp["l2_w"], sp["l2_b"])


# ----------------------------------------------------------------------------
# im2col glue (layout only; the GEMMs run inside Pallas).
# Column order is (kh, kw, cin); conv weights were pre-permuted at init to
# exactly this order, so no per-call weight reshapes/transposes are needed.
# ----------------------------------------------------------------------------
def _im2col_nhwc(x, k, stride, OH, OW):
    N = x.shape[0]
    slices = [x[:, kh:kh + stride * OH:stride, kw:kw + stride * OW:stride, :]
              for kh in range(k) for kw in range(k)]
    cols = jnp.concatenate(slices, axis=-1)            # (N, OH, OW, k*k*Cin)
    return cols.reshape(N * OH * OW, cols.shape[-1])   # contiguous -> free


def pixel_encoder_features(obs_all, ep, num_layers):
    """Conv stack on the 3x-batched observations -> flattened features (3B, flat)."""
    N, _, H, W = obs_all.shape
    x = jnp.transpose(obs_all, (0, 2, 3, 1))           # NHWC, one tiny copy

    # conv 1: stride 2, /255 folded into the kernel (static Python-float scale)
    OH = (H - 3) // 2 + 1
    OW = (W - 3) // 2 + 1
    cols = _im2col_nhwc(x, 3, 2, OH, OW)
    h = gemm_bias_relu(cols, ep["conv_w"][0], ep["conv_b"][0], scale=1.0 / 255.0)
    nf = h.shape[-1]

    # conv 2..num_layers: stride 1
    for i in range(1, num_layers):
        img = h.reshape(N, OH, OW, nf)                 # contiguous -> free
        OH, OW = OH - 2, OW - 2
        cols = _im2col_nhwc(img, 3, 1, OH, OW)
        h = gemm_bias_relu(cols, ep["conv_w"][i], ep["conv_b"][i], scale=None)

    # per-sample flatten in (oh, ow, c) order (fc weight pre-permuted to match)
    return h.reshape(N, OH * OW * nf)                  # contiguous -> free


def domain_specific_visual_forward(params, obs1, act1, obs2, act2, obs3, *, num_layers):
    # batch the three encoder passes into one
    obs_all = jnp.concatenate([obs1, obs2, obs3], axis=0)          # (3B, C, H, W)
    h_flat = pixel_encoder_features(obs_all, params["encoder"], num_layers)
    return head_forward(h_flat, act1, act2, params["encoder"], params["specific"])


# ----------------------------------------------------------------------------
# Deterministic parameter construction.
# Canonical (PyTorch-layout) weights are sampled, then pre-packed ONCE into the
# GEMM layouts the kernels consume.
# ----------------------------------------------------------------------------
def init_params(key, obs_shape, action_shape, encoder_feature_dim, num_layers,
                num_filters, dynamics_output_shape, hidden_dim=20):
    C, H, W = obs_shape
    A = action_shape[0]
    keys = iter(jax.random.split(key, num_layers + 4))

    def w_init(shape, scale=0.05):
        return (scale * jax.random.normal(next(keys), shape)).astype(jnp.float32)

    # conv spatial dims
    oh = (H - 3) // 2 + 1
    ow = (W - 3) // 2 + 1
    for _ in range(num_layers - 1):
        oh, ow = oh - 2, ow - 2
    flat_dim = num_filters * oh * ow

    # conv weights: torch (Cout, Cin, 3, 3) -> GEMM matrix with rows in
    # (kh, kw, cin) order (matches im2col column order), cols = Cout.
    conv_w, conv_b = [], []
    cin = C
    for _ in range(num_layers):
        wt = w_init((num_filters, cin, 3, 3))
        conv_w.append(jnp.transpose(wt, (2, 3, 1, 0)).reshape(9 * cin, num_filters))
        conv_b.append(jnp.zeros((1, num_filters), jnp.float32))
        cin = num_filters

    # fc weight: canonical rows in torch NCHW-flatten order (c, oh, ow);
    # permute rows once to our (oh, ow, c) flatten order.
    fc_w_canon = w_init((flat_dim, encoder_feature_dim))
    fc_w = (fc_w_canon.reshape(num_filters, oh, ow, encoder_feature_dim)
            .transpose(1, 2, 0, 3).reshape(oh * ow * num_filters, encoder_feature_dim))

    encoder = dict(
        conv_w=conv_w, conv_b=conv_b,
        fc_w=fc_w,
        fc_b=jnp.zeros((1, encoder_feature_dim), jnp.float32),
        ln_g=jnp.ones((1, encoder_feature_dim), jnp.float32),
        ln_b=jnp.zeros((1, encoder_feature_dim), jnp.float32),
    )

    # specific MLP: first layer weight split into the 5 blocks matching the
    # [e1, act1, e2, act2, e3] concat so the concat is fused into partial dots.
    F = encoder_feature_dim
    in_dim = 3 * F + 2 * A
    l0_w = w_init((in_dim, hidden_dim))
    specific = dict(
        w0_e1=l0_w[0:F],
        w0_a1=l0_w[F:F + A],
        w0_e2=l0_w[F + A:2 * F + A],
        w0_a2=l0_w[2 * F + A:2 * F + 2 * A],
        w0_e3=l0_w[2 * F + 2 * A:],
        l0_b=jnp.zeros((1, hidden_dim), jnp.float32),
        l1_w=w_init((hidden_dim, hidden_dim)),
        l1_b=jnp.zeros((1, hidden_dim), jnp.float32),
        l2_w=w_init((hidden_dim, dynamics_output_shape)),
        l2_b=jnp.zeros((1, dynamics_output_shape), jnp.float32),
    )
    return dict(encoder=encoder, specific=specific)


# ----------------------------------------------------------------------------
if __name__ == "__main__":
    B = 2
    obs_shape = (4, 16, 16)          # (C, H, W)
    action_shape = (3,)
    encoder_feature_dim = 32
    num_layers = 2
    num_filters = 8
    num_shared_layers = 2            # no effect on forward math
    dynamics_output_shape = 16
    hidden_dim = 20

    root = jax.random.PRNGKey(0)
    kp, k1, k2, k3, k4, k5 = jax.random.split(root, 6)

    params = init_params(kp, obs_shape, action_shape, encoder_feature_dim,
                         num_layers, num_filters, dynamics_output_shape, hidden_dim)

    obs1 = jax.random.uniform(k1, (B,) + obs_shape, jnp.float32, 0.0, 255.0)
    obs2 = jax.random.uniform(k2, (B,) + obs_shape, jnp.float32, 0.0, 255.0)
    obs3 = jax.random.uniform(k3, (B,) + obs_shape, jnp.float32, 0.0, 255.0)
    act1 = jax.random.normal(k4, (B, action_shape[0]), jnp.float32)
    act2 = jax.random.normal(k5, (B, action_shape[0]), jnp.float32)

    # num_layers is baked in statically (avoids TracerIntegerConversionError).
    fwd = jax.jit(functools.partial(domain_specific_visual_forward,
                                    num_layers=num_layers))
    out = fwd(params, obs1, act1, obs2, act2, obs3)
    jax.block_until_ready(out)

    assert out.shape == (B, dynamics_output_shape), out.shape
    assert out.dtype == jnp.float32
    print("KERNEL_OK")
</pallas_src>

<mosaic_0001>
module attributes {stable_mosaic.version = 11 : i64} {
  func.func @_gemm_bias_relu_kernel(%arg0: memref<294x36xf32, #tpu.memory_space<vmem>>, %arg1: memref<36x8xf32, #tpu.memory_space<vmem>>, %arg2: memref<1x8xf32, #tpu.memory_space<vmem>>, %arg3: memref<294x8xf32, #tpu.memory_space<vmem>>) attributes {dimension_semantics = [], scalar_prefetch = 0 : i64, scratch_operands = 0 : i64, tpu.core_type = #tpu.core_type<tc>} {
    %c0 = arith.constant 0 : index
    %c0_0 = arith.constant 0 : index
    %0 = vector.load %arg0[%c0, %c0_0] : memref<294x36xf32, #tpu.memory_space<vmem>>, vector<294x36xf32>
    %cst = arith.constant 0.00392156886 : f32
    %1 = vector.broadcast %cst : f32 to vector<294x36xf32>
    %2 = arith.mulf %0, %1 : vector<294x36xf32>
    %c0_1 = arith.constant 0 : index
    %c0_2 = arith.constant 0 : index
    %3 = vector.load %arg1[%c0_1, %c0_2] : memref<36x8xf32, #tpu.memory_space<vmem>>, vector<36x8xf32>
    %cst_3 = arith.constant dense<0.000000e+00> : vector<294x8xf32>
    %4 = tpu.matmul %2, %3, %cst_3 {dimension_numbers = #tpu.dot_dimension_numbers<[1], [0], [0], [1], [0, 0, 1, 1], [], []>} : vector<294x36xf32>, vector<36x8xf32>, vector<294x8xf32> -> vector<294x8xf32>
    %c0_4 = arith.constant 0 : index
    %c0_5 = arith.constant 0 : index
    %5 = vector.load %arg2[%c0_4, %c0_5] : memref<1x8xf32, #tpu.memory_space<vmem>>, vector<1x8xf32>
    %6 = vector.broadcast %5 : vector<1x8xf32> to vector<294x8xf32>
    %7 = arith.addf %4, %6 : vector<294x8xf32>
    %cst_6 = arith.constant 0.000000e+00 : f32
    %8 = vector.broadcast %cst_6 : f32 to vector<294x8xf32>
    %9 = arith.maximumf %7, %8 : vector<294x8xf32>
    %c0_7 = arith.constant 0 : index
    %c0_8 = arith.constant 0 : index
    %10 = vector.load %arg3[%c0_7, %c0_8] : memref<294x8xf32, #tpu.memory_space<vmem>>, vector<294x8xf32>
    tpu.vector_store %arg3[%c0_7, %c0_8], %9 {strides = array<i32>} : memref<294x8xf32, #tpu.memory_space<vmem>>, vector<294x8xf32>,
    return
  }
}

module attributes {stable_mosaic.version = 11 : i64} {
  func.func @_gemm_bias_relu_kernel(%arg0: memref<150x72xf32, #tpu.memory_space<vmem>>, %arg1: memref<72x8xf32, #tpu.memory_space<vmem>>, %arg2: memref<1x8xf32, #tpu.memory_space<vmem>>, %arg3: memref<150x8xf32, #tpu.memory_space<vmem>>) attributes {dimension_semantics = [], scalar_prefetch = 0 : i64, scratch_operands = 0 : i64, tpu.core_type = #tpu.core_type<tc>} {
    %c0 = arith.constant 0 : index
    %c0_0 = arith.constant 0 : index
    %0 = vector.load %arg0[%c0, %c0_0] : memref<150x72xf32, #tpu.memory_space<vmem>>, vector<150x72xf32>
    %c0_1 = arith.constant 0 : index
    %c0_2 = arith.constant 0 : index
    %1 = vector.load %arg1[%c0_1, %c0_2] : memref<72x8xf32, #tpu.memory_space<vmem>>, vector<72x8xf32>
    %cst = arith.constant dense<0.000000e+00> : vector<150x8xf32>
    %2 = tpu.matmul %0, %1, %cst {dimension_numbers = #tpu.dot_dimension_numbers<[1], [0], [0], [1], [0, 0, 1, 1], [], []>} : vector<150x72xf32>, vector<72x8xf32>, vector<150x8xf32> -> vector<150x8xf32>
    %c0_3 = arith.constant 0 : index
    %c0_4 = arith.constant 0 : index
    %3 = vector.load %arg2[%c0_3, %c0_4] : memref<1x8xf32, #tpu.memory_space<vmem>>, vector<1x8xf32>
    %4 = vector.broadcast %3 : vector<1x8xf32> to vector<150x8xf32>
    %5 = arith.addf %2, %4 : vector<150x8xf32>
    %cst_5 = arith.constant 0.000000e+00 : f32
    %6 = vector.broadcast %cst_5 : f32 to vector<150x8xf32>
    %7 = arith.maximumf %5, %6 : vector<150x8xf32>
    %c0_6 = arith.constant 0 : index
    %c0_7 = arith.constant 0 : index
    %8 = vector.load %arg3[%c0_6, %c0_7] : memref<150x8xf32, #tpu.memory_space<vmem>>, vector<150x8xf32>
    tpu.vector_store %arg3[%c0_6, %c0_7], %7 {strides = array<i32>} : memref<150x8xf32, #tpu.memory_space<vmem>>, vector<150x8xf32>,
    return
  }
}

module attributes {stable_mosaic.version = 11 : i64} {
  func.func @_head_kernel(%arg0: memref<6x200xf32, #tpu.memory_space<vmem>>, %arg1: memref<200x32xf32, #tpu.memory_space<vmem>>, %arg2: memref<1x32xf32, #tpu.memory_space<vmem>>, %arg3: memref<1x32xf32, #tpu.memory_space<vmem>>, %arg4: memref<1x32xf32, #tpu.memory_space<vmem>>, %arg5: memref<2x3xf32, #tpu.memory_space<vmem>>, %arg6: memref<2x3xf32, #tpu.memory_space<vmem>>, %arg7: memref<32x20xf32, #tpu.memory_space<vmem>>, %arg8: memref<3x20xf32, #tpu.memory_space<vmem>>, %arg9: memref<32x20xf32, #tpu.memory_space<vmem>>, %arg10: memref<3x20xf32, #tpu.memory_space<vmem>>, %arg11: memref<32x20xf32, #tpu.memory_space<vmem>>, %arg12: memref<1x20xf32, #tpu.memory_space<vmem>>, %arg13: memref<20x20xf32, #tpu.memory_space<vmem>>, %arg14: memref<1x20xf32, #tpu.memory_space<vmem>>, %arg15: memref<20x16xf32, #tpu.memory_space<vmem>>, %arg16: memref<1x16xf32, #tpu.memory_space<vmem>>, %arg17: memref<2x16xf32, #tpu.memory_space<vmem>>) attributes {dimension_semantics = [], scalar_prefetch = 0 : i64, scratch_operands = 0 : i64, tpu.core_type = #tpu.core_type<tc>} {
    %c0 = arith.constant 0 : index
    %c0_0 = arith.constant 0 : index
    %0 = vector.load %arg0[%c0, %c0_0] : memref<6x200xf32, #tpu.memory_space<vmem>>, vector<6x200xf32>
    %c0_1 = arith.constant 0 : index
    %c0_2 = arith.constant 0 : index
    %1 = vector.load %arg1[%c0_1, %c0_2] : memref<200x32xf32, #tpu.memory_space<vmem>>, vector<200x32xf32>
    %cst = arith.constant dense<0.000000e+00> : vector<6x32xf32>
    %2 = tpu.matmul %0, %1, %cst {dimension_numbers = #tpu.dot_dimension_numbers<[1], [0], [0], [1], [0, 0, 1, 1], [], []>} : vector<6x200xf32>, vector<200x32xf32>, vector<6x32xf32> -> vector<6x32xf32>
    %c0_3 = arith.constant 0 : index
    %c0_4 = arith.constant 0 : index
    %3 = vector.load %arg2[%c0_3, %c0_4] : memref<1x32xf32, #tpu.memory_space<vmem>>, vector<1x32xf32>
    %4 = vector.broadcast %3 : vector<1x32xf32> to vector<6x32xf32>
    %5 = arith.addf %2, %4 : vector<6x32xf32>
    %cst_5 = arith.constant dense<0.000000e+00> : vector<6xf32>
    %6 = vector.multi_reduction <add>, %5, %cst_5 [1] : vector<6x32xf32> to vector<6xf32>
    %7 = vector.shape_cast %6 : vector<6xf32> to vector<6x1xf32>
    %cst_6 = arith.constant 3.200000e+01 : f32
    %8 = vector.broadcast %cst_6 : f32 to vector<6x1xf32>
    %9 = arith.divf %7, %8 : vector<6x1xf32>
    %10 = vector.broadcast %9 : vector<6x1xf32> to vector<6x32xf32>
    %11 = arith.subf %5, %10 : vector<6x32xf32>
    %12 = arith.mulf %11, %11 : vector<6x32xf32>
    %cst_7 = arith.constant dense<0.000000e+00> : vector<6xf32>
    %13 = vector.multi_reduction <add>, %12, %cst_7 [1] : vector<6x32xf32> to vector<6xf32>
    %14 = vector.shape_cast %13 : vector<6xf32> to vector<6x1xf32>
    %cst_8 = arith.constant 3.200000e+01 : f32
    %15 = vector.broadcast %cst_8 : f32 to vector<6x1xf32>
    %16 = arith.divf %14, %15 : vector<6x1xf32>
    %17 = vector.broadcast %9 : vector<6x1xf32> to vector<6x32xf32>
    %18 = arith.subf %5, %17 : vector<6x32xf32>
    %cst_9 = arith.constant 9.99999974E-6 : f32
    %19 = vector.broadcast %cst_9 : f32 to vector<6x1xf32>
    %20 = arith.addf %16, %19 : vector<6x1xf32>
    %21 = math.rsqrt %20 : vector<6x1xf32>
    %22 = vector.broadcast %21 : vector<6x1xf32> to vector<6x32xf32>
    %23 = arith.mulf %18, %22 : vector<6x32xf32>
    %c0_10 = arith.constant 0 : index
    %c0_11 = arith.constant 0 : index
    %24 = vector.load %arg3[%c0_10, %c0_11] : memref<1x32xf32, #tpu.memory_space<vmem>>, vector<1x32xf32>
    %25 = vector.broadcast %24 : vector<1x32xf32> to vector<6x32xf32>
    %26 = arith.mulf %23, %25 : vector<6x32xf32>
    %c0_12 = arith.constant 0 : index
    %c0_13 = arith.constant 0 : index
    %27 = vector.load %arg4[%c0_12, %c0_13] : memref<1x32xf32, #tpu.memory_space<vmem>>, vector<1x32xf32>
    %28 = vector.broadcast %27 : vector<1x32xf32> to vector<6x32xf32>
    %29 = arith.addf %26, %28 : vector<6x32xf32>
    %30 = math.tanh %29 : vector<6x32xf32>
    %31 = vector.extract_strided_slice %30 {offsets = [0, 0], sizes = [2, 32], strides = [1, 1]} : vector<6x32xf32> to vector<2x32xf32>
    %32 = vector.extract_strided_slice %30 {offsets = [2, 0], sizes = [2, 32], strides = [1, 1]} : vector<6x32xf32> to vector<2x32xf32>
    %33 = vector.extract_strided_slice %30 {offsets = [4, 0], sizes = [2, 32], strides = [1, 1]} : vector<6x32xf32> to vector<2x32xf32>
    %c0_14 = arith.constant 0 : index
    %c0_15 = arith.constant 0 : index
    %34 = vector.load %arg7[%c0_14, %c0_15] : memref<32x20xf32, #tpu.memory_space<vmem>>, vector<32x20xf32>
    %cst_16 = arith.constant dense<0.000000e+00> : vector<2x20xf32>
    %35 = tpu.matmul %31, %34, %cst_16 {dimension_numbers = #tpu.dot_dimension_numbers<[1], [0], [0], [1], [0, 0, 1, 1], [], []>} : vector<2x32xf32>, vector<32x20xf32>, vector<2x20xf32> -> vector<2x20xf32>
    %c0_17 = arith.constant 0 : index
    %c0_18 = arith.constant 0 : index
    %36 = vector.load %arg5[%c0_17, %c0_18] : memref<2x3xf32, #tpu.memory_space<vmem>>, vector<2x3xf32>
    %c0_19 = arith.constant 0 : index
    %c0_20 = arith.constant 0 : index
    %37 = vector.load %arg8[%c0_19, %c0_20] : memref<3x20xf32, #tpu.memory_space<vmem>>, vector<3x20xf32>
    %cst_21 = arith.constant dense<0.000000e+00> : vector<2x20xf32>
    %38 = tpu.matmul %36, %37, %cst_21 {dimension_numbers = #tpu.dot_dimension_numbers<[1], [0], [0], [1], [0, 0, 1, 1], [], []>} : vector<2x3xf32>, vector<3x20xf32>, vector<2x20xf32> -> vector<2x20xf32>
    %39 = arith.addf %35, %38 : vector<2x20xf32>
    %c0_22 = arith.constant 0 : index
    %c0_23 = arith.constant 0 : index
    %40 = vector.load %arg9[%c0_22, %c0_23] : memref<32x20xf32, #tpu.memory_space<vmem>>, vector<32x20xf32>
    %cst_24 = arith.constant dense<0.000000e+00> : vector<2x20xf32>
    %41 = tpu.matmul %32, %40, %cst_24 {dimension_numbers = #tpu.dot_dimension_numbers<[1], [0], [0], [1], [0, 0, 1, 1], [], []>} : vector<2x32xf32>, vector<32x20xf32>, vector<2x20xf32> -> vector<2x20xf32>
    %42 = arith.addf %39, %41 : vector<2x20xf32>
    %c0_25 = arith.constant 0 : index
    %c0_26 = arith.constant 0 : index
    %43 = vector.load %arg6[%c0_25, %c0_26] : memref<2x3xf32, #tpu.memory_space<vmem>>, vector<2x3xf32>
    %c0_27 = arith.constant 0 : index
    %c0_28 = arith.constant 0 : index
    %44 = vector.load %arg10[%c0_27, %c0_28] : memref<3x20xf32, #tpu.memory_space<vmem>>, vector<3x20xf32>
    %cst_29 = arith.constant dense<0.000000e+00> : vector<2x20xf32>
    %45 = tpu.matmul %43, %44, %cst_29 {dimension_numbers = #tpu.dot_dimension_numbers<[1], [0], [0], [1], [0, 0, 1, 1], [], []>} : vector<2x3xf32>, vector<3x20xf32>, vector<2x20xf32> -> vector<2x20xf32>
    %46 = arith.addf %42, %45 : vector<2x20xf32>
    %c0_30 = arith.constant 0 : index
    %c0_31 = arith.constant 0 : index
    %47 = vector.load %arg11[%c0_30, %c0_31] : memref<32x20xf32, #tpu.memory_space<vmem>>, vector<32x20xf32>
    %cst_32 = arith.constant dense<0.000000e+00> : vector<2x20xf32>
    %48 = tpu.matmul %33, %47, %cst_32 {dimension_numbers = #tpu.dot_dimension_numbers<[1], [0], [0], [1], [0, 0, 1, 1], [], []>} : vector<2x32xf32>, vector<32x20xf32>, vector<2x20xf32> -> vector<2x20xf32>
    %49 = arith.addf %46, %48 : vector<2x20xf32>
    %c0_33 = arith.constant 0 : index
    %c0_34 = arith.constant 0 : index
    %50 = vector.load %arg12[%c0_33, %c0_34] : memref<1x20xf32, #tpu.memory_space<vmem>>, vector<1x20xf32>
    %51 = vector.broadcast %50 : vector<1x20xf32> to vector<2x20xf32>
    %52 = arith.addf %49, %51 : vector<2x20xf32>
    %cst_35 = arith.constant 0.000000e+00 : f32
    %53 = vector.broadcast %cst_35 : f32 to vector<2x20xf32>
    %54 = arith.maximumf %52, %53 : vector<2x20xf32>
    %c0_36 = arith.constant 0 : index
    %c0_37 = arith.constant 0 : index
    %55 = vector.load %arg13[%c0_36, %c0_37] : memref<20x20xf32, #tpu.memory_space<vmem>>, vector<20x20xf32>
    %cst_38 = arith.constant dense<0.000000e+00> : vector<2x20xf32>
    %56 = tpu.matmul %54, %55, %cst_38 {dimension_numbers = #tpu.dot_dimension_numbers<[1], [0], [0], [1], [0, 0, 1, 1], [], []>} : vector<2x20xf32>, vector<20x20xf32>, vector<2x20xf32> -> vector<2x20xf32>
    %c0_39 = arith.constant 0 : index
    %c0_40 = arith.constant 0 : index
    %57 = vector.load %arg14[%c0_39, %c0_40] : memref<1x20xf32, #tpu.memory_space<vmem>>, vector<1x20xf32>
    %58 = vector.broadcast %57 : vector<1x20xf32> to vector<2x20xf32>
    %59 = arith.addf %56, %58 : vector<2x20xf32>
    %cst_41 = arith.constant 0.000000e+00 : f32
    %60 = vector.broadcast %cst_41 : f32 to vector<2x20xf32>
    %61 = arith.maximumf %59, %60 : vector<2x20xf32>
    %c0_42 = arith.constant 0 : index
    %c0_43 = arith.constant 0 : index
    %62 = vector.load %arg15[%c0_42, %c0_43] : memref<20x16xf32, #tpu.memory_space<vmem>>, vector<20x16xf32>
    %cst_44 = arith.constant dense<0.000000e+00> : vector<2x16xf32>
    %63 = tpu.matmul %61, %62, %cst_44 {dimension_numbers = #tpu.dot_dimension_numbers<[1], [0], [0], [1], [0, 0, 1, 1], [], []>} : vector<2x20xf32>, vector<20x16xf32>, vector<2x16xf32> -> vector<2x16xf32>
    %c0_45 = arith.constant 0 : index
    %c0_46 = arith.constant 0 : index
    %64 = vector.load %arg16[%c0_45, %c0_46] : memref<1x16xf32, #tpu.memory_space<vmem>>, vector<1x16xf32>
    %65 = vector.broadcast %64 : vector<1x16xf32> to vector<2x16xf32>
    %66 = arith.addf %63, %65 : vector<2x16xf32>
    %c0_47 = arith.constant 0 : index
    %c0_48 = arith.constant 0 : index
    %67 = vector.load %arg17[%c0_47, %c0_48] : memref<2x16xf32, #tpu.memory_space<vmem>>, vector<2x16xf32>
    tpu.vector_store %arg17[%c0_47, %c0_48], %66 {strides = array<i32>} : memref<2x16xf32, #tpu.memory_space<vmem>>, vector<2x16xf32>,
    return
  }
}

</mosaic_0001>

<llo_original>
// kernel: domain_specific_visual_forward.3
$region0: #{domain_specific_visual_forward.3}
  #allocation0 [shape = 'u32[]', space=smem, size = 0x4, offset = 0x4, fixed_abs, tag = 'smem constant byte address 0x4 - core index']
  #allocation1 [shape = 'u32[144,128]{1,0:T(1,128)}', space=vmem, size = 0x12000, scoped, tag = 'internal scratch']
  %s0 = inlined_call_operand.vmem [shape: f32[294,36], index: 0, kind: input, shape index: {}]
  %s1 = inlined_call_operand.vmem [shape: f32[36,8], index: 1, kind: input, shape index: {}]
  %s2 = inlined_call_operand.vmem [shape: f32[1,8], index: 2, kind: input, shape index: {}]
  %s3 = inlined_call_operand.vmem [shape: f32[294,8], index: 3, kind: output, shape index: {}]
  %s4 = sld [smem:[#allocation0]]
  $region22: #{domain_specific_visual_forward.3} parent=0
    _
  %s6 = ssub.s32 1, %s4
  %s7 = scalar_select 0, %s6, %s4
  // Predicated region
  $region2: #{domain_specific_visual_forward.3} parent=0 // pred_check
    _
  $region3: #{domain_specific_visual_forward.3} parent=0 // pred_check_branch
    %9 = sbr.rel (0) target = $region5
  $region4: #{domain_specific_visual_forward.3} parent=0 // pred_region
    _
  $region5: #{domain_specific_visual_forward.3} parent=0 // pred_fallthru
    _
  // Predicated region
  $region6: #{domain_specific_visual_forward.3} parent=0 // pred_check
    _
  $region7: #{domain_specific_visual_forward.3} parent=0 // pred_check_branch
    %11 = sbr.rel (0) target = $region9
  $region8: #{domain_specific_visual_forward.3} parent=0 // pred_region
    _
  $region9: #{domain_specific_visual_forward.3} parent=0 // pred_fallthru
    _
  // Predicated region
  $region10: #{domain_specific_visual_forward.3} parent=0 // pred_check
    _
  $region11: #{domain_specific_visual_forward.3} parent=0 // pred_check_branch
    %13 = sbr.rel (0) target = $region13
  $region12: #{domain_specific_visual_forward.3} parent=0 // pred_region
    _
  $region13: #{domain_specific_visual_forward.3} parent=0 // pred_fallthru
    _
  %v14 = vld [vmem:[%s0] sm:$0xff]
  %v15 = vld [vmem:[%s0 + $0x8] sm:$0xff]
  %v16 = vld [vmem:[%s0 + $0x10] sm:$0xff]
  %v17 = vld [vmem:[%s0 + $0x18] sm:$0xff]
  %v18 = vld [vmem:[%s0 + $0x20] sm:$0xff]
  %v19 = vld [vmem:[%s0 + $0x28] sm:$0xff]
  %v20 = vld [vmem:[%s0 + $0x30] sm:$0xff]
  %v21 = vld [vmem:[%s0 + $0x38] sm:$0xff]
  %v22 = vld [vmem:[%s0 + $0x40] sm:$0xff]
  %v23 = vld [vmem:[%s0 + $0x48] sm:$0xff]
  %v24 = vld [vmem:[%s0 + $0x50] sm:$0xff]
  %v25 = vld [vmem:[%s0 + $0x58] sm:$0xff]
  %v26 = vld [vmem:[%s0 + $0x60] sm:$0xff]
  %v27 = vld [vmem:[%s0 + $0x68] sm:$0xff]
  %v28 = vld [vmem:[%s0 + $0x70] sm:$0xff]
  %v29 = vld [vmem:[%s0 + $0x78] sm:$0xff]
  %v30 = vld [vmem:[%s0 + $0x80] sm:$0xff]
  %v31 = vld [vmem:[%s0 + $0x88] sm:$0xff]
  %v32 = vld [vmem:[%s0 + $0x90] sm:$0xff]
  %v33 = vld [vmem:[%s0 + $0x98] sm:$0xff]
  %v34 = vld [vmem:[%s0 + $0xa0] sm:$0xff]
  %v35 = vld [vmem:[%s0 + $0xa8] sm:$0xff]
  %v36 = vld [vmem:[%s0 + $0xb0] sm:$0xff]
  %v37 = vld [vmem:[%s0 + $0xb8] sm:$0xff]
  %v38 = vld [vmem:[%s0 + $0xc0] sm:$0xff]
  %v39 = vld [vmem:[%s0 + $0xc8] sm:$0xff]
  %v40 = vld [vmem:[%s0 + $0xd0] sm:$0xff]
  %v41 = vld [vmem:[%s0 + $0xd8] sm:$0xff]
  %v42 = vld [vmem:[%s0 + $0xe0] sm:$0xff]
  %v43 = vld [vmem:[%s0 + $0xe8] sm:$0xff]
  %v44 = vld [vmem:[%s0 + $0xf0] sm:$0xff]
  %v45 = vld [vmem:[%s0 + $0xf8] sm:$0xff]
  %v46 = vld [vmem:[%s0 + $0x100] sm:$0xff]
  %v47 = vld [vmem:[%s0 + $0x108] sm:$0xff]
  %v48 = vld [vmem:[%s0 + $0x110] sm:$0xff]
  %v49 = vld [vmem:[%s0 + $0x118] sm:$0xff]
  %v50 = vld [vmem:[%s0 + $0x120] sm:$0x3f]
  %v51 = vmul.f32 %v14, 0.003921569
  %v52 = vmul.f32 %v15, 0.003921569
  %v53 = vmul.f32 %v16, 0.003921569
  %v54 = vmul.f32 %v17, 0.003921569
  %v55 = vmul.f32 %v18, 0.003921569
  %v56 = vmul.f32 %v19, 0.003921569
  %v57 = vmul.f32 %v20, 0.003921569
  %v58 = vmul.f32 %v21, 0.003921569
  %v59 = vmul.f32 %v22, 0.003921569
  %v60 = vmul.f32 %v23, 0.003921569
  %v61 = vmul.f32 %v24, 0.003921569
  %v62 = vmul.f32 %v25, 0.003921569
  %v63 = vmul.f32 %v26, 0.003921569
  %v64 = vmul.f32 %v27, 0.003921569
  %v65 = vmul.f32 %v28, 0.003921569
  %v66 = vmul.f32 %v29, 0.003921569
  %v67 = vmul.f32 %v30, 0.003921569
  %v68 = vmul.f32 %v31, 0.003921569
  %v69 = vmul.f32 %v32, 0.003921569
  %v70 = vmul.f32 %v33, 0.003921569
  %v71 = vmul.f32 %v34, 0.003921569
  %v72 = vmul.f32 %v35, 0.003921569
  %v73 = vmul.f32 %v36, 0.003921569
  %v74 = vmul.f32 %v37, 0.003921569
  %v75 = vmul.f32 %v38, 0.003921569
  %v76 = vmul.f32 %v39, 0.003921569
  %v77 = vmul.f32 %v40, 0.003921569
  %v78 = vmul.f32 %v41, 0.003921569
  %v79 = vmul.f32 %v42, 0.003921569
  %v80 = vmul.f32 %v43, 0.003921569
  %v81 = vmul.f32 %v44, 0.003921569
  %v82 = vmul.f32 %v45, 0.003921569
  %v83 = vmul.f32 %v46, 0.003921569
  %v84 = vmul.f32 %v47, 0.003921569
  %v85 = vmul.f32 %v48, 0.003921569
  %v86 = vmul.f32 %v49, 0.003921569
  %v87 = vmul.f32 %v50, 0.003921569
  %v88 = vld [vmem:[%s1] sm:$0xff]
  %v89 = vld [vmem:[%s1 + $0x8] sm:$0xff]
  %v90 = vld [vmem:[%s1 + $0x10] sm:$0xff]
  %v91 = vld [vmem:[%s1 + $0x18] sm:$0xff]
  %v92 = vld [vmem:[%s1 + $0x20] sm:$0xf]
  %v93 = vld [vmem:[%s2] sm:$0x1]
  %v95 = vlaneseq
  %v96 = vshrl.u32 %v95, 7
  %v97 = vsub.s32 0, %v96
  %v98 = vrot.slane %v93, %v97
  %vm100 = vcmask 293888
  %v102 = vsel %vm100, %v51, 0
  %v105 = vsel %vm100, %v52, 0
  %v108 = vsel %vm100, %v53, 0
  %v111 = vsel %vm100, %v54, 0
  %v114 = vsel %vm100, %v55, 0
  %v117 = vsel %vm100, %v56, 0
  %v120 = vsel %vm100, %v57, 0
  %v123 = vsel %vm100, %v58, 0
  %v126 = vsel %vm100, %v59, 0
  %v129 = vsel %vm100, %v60, 0
  %v132 = vsel %vm100, %v61, 0
  %v135 = vsel %vm100, %v62, 0
  %v138 = vsel %vm100, %v63, 0
  %v141 = vsel %vm100, %v64, 0
  %v144 = vsel %vm100, %v65, 0
  %v147 = vsel %vm100, %v66, 0
  %v150 = vsel %vm100, %v67, 0
  %v153 = vsel %vm100, %v68, 0
  %v156 = vsel %vm100, %v69, 0
  %v159 = vsel %vm100, %v70, 0
  %v162 = vsel %vm100, %v71, 0
  %v165 = vsel %vm100, %v72, 0
  %v168 = vsel %vm100, %v73, 0
  %v171 = vsel %vm100, %v74, 0
  %v174 = vsel %vm100, %v75, 0
  %v177 = vsel %vm100, %v76, 0
  %v180 = vsel %vm100, %v77, 0
  %v183 = vsel %vm100, %v78, 0
  %v186 = vsel %vm100, %v79, 0
  %v189 = vsel %vm100, %v80, 0
  %v192 = vsel %vm100, %v81, 0
  %v195 = vsel %vm100, %v82, 0
  %v198 = vsel %vm100, %v83, 0
  %v201 = vsel %vm100, %v84, 0
  %v204 = vsel %vm100, %v85, 0
  %v207 = vsel %vm100, %v86, 0
  %v210 = vsel %vm100, %v87, 0
  %vm212 = vcmask 1043456
  %v214 = vsel %vm212, %v92, 0
  %216 = vmatprep.subr.mxu0 0.0
  %217 = vmatpush1.msra.mxu0 %v88
  %218 = vmatprep.subr.mxu0 0.0
  %219 = vmatpush1.msra.mxu0 %v89
  %220 = vmatprep.subr.mxu0 0.0
  %221 = vmatpush1.msra.mxu0 %v90
  %222 = vmatprep.subr.mxu0 0.0
  %223 = vmatpush1.msra.mxu0 %v91
  %224 = vmatprep.subr.mxu0 0.0
  %225 = vmatpush1.msra.mxu0 %v214
  %226 = vmatprep.subr.mxu0 0.0
  %227 = vmatpush1.msra.mxu0 0.0
  %228 = vmatprep.subr.mxu0 0.0
  %229 = vmatpush1.msra.mxu0 0.0
  %230 = vmatprep.subr.mxu0 0.0
  %231 = vmatpush1.msra.mxu0 0.0
  %232 = vmatprep.subr.mxu0 0.0
  %233 = vmatpush1.msra.mxu0 0.0
  %234 = vmatprep.subr.mxu0 0.0
  %235 = vmatpush1.msra.mxu0 0.0
  %236 = vmatprep.subr.mxu0 0.0
  %237 = vmatpush1.msra.mxu0 0.0
  %238 = vmatprep.subr.mxu0 0.0
  %239 = vmatpush1.msra.mxu0 0.0
  %240 = vmatprep.subr.mxu0 0.0
  %241 = vmatpush1.msra.mxu0 0.0
  %242 = vmatprep.subr.mxu0 0.0
  %243 = vmatpush1.msra.mxu0 0.0
  %244 = vmatprep.subr.mxu0 0.0
  %245 = vmatpush1.msra.mxu0 0.0
  %246 = vmatprep.subr.mxu0 0.0
  %247 = vmatpush1.msra.mxu0 0.0
  %248 = vmatprep.subr.mxu0 0.0
  %249 = vmatpush1.msra.mxu0 0.0
  %250 = vmatprep.subr.mxu0 0.0
  %251 = vmatpush1.msra.mxu0 0.0
  %252 = vmatprep.subr.mxu0 0.0
  %253 = vmatpush1.msra.mxu0 0.0
  %254 = vmatprep.subr.mxu0 0.0
  %255 = vmatpush1.msra.mxu0 0.0
  %256 = vmatprep.subr.mxu0 0.0
  %257 = vmatpush1.msra.mxu0 0.0
  %258 = vmatprep.subr.mxu0 0.0
  %259 = vmatpush1.msra.mxu0 0.0
  %260 = vmatprep.subr.mxu0 0.0
  %261 = vmatpush1.msra.mxu0 0.0
  %262 = vmatprep.subr.mxu0 0.0
  %263 = vmatpush1.msra.mxu0 0.0
  %264 = vmatprep.subr.mxu0 0.0
  %265 = vmatpush1.msra.mxu0 0.0
  %266 = vmatprep.subr.mxu0 0.0
  %267 = vmatpush1.msra.mxu0 0.0
  %268 = vmatprep.subr.mxu0 0.0
  %269 = vmatpush1.msra.mxu0 0.0
  %270 = vmatprep.subr.mxu0 0.0
  %271 = vmatpush1.msra.mxu0 0.0
  %272 = vmatprep.subr.mxu0 0.0
  %273 = vmatpush1.msra.mxu0 0.0
  %274 = vmatprep.subr.mxu0 0.0
  %275 = vmatpush1.msra.mxu0 0.0
  %276 = vmatprep.subr.mxu0 0.0
  %277 = vmatpush1.msra.mxu0 0.0
  %278 = vmatprep.subr.mxu0 0.0
  %279 = vmatpush1.msra.mxu0 0.0
  %280 = vmatprep.mubr.f32.mxu0 0.0
  %281 = vmatmul.mubr.f32.gmra.mrb[0].mxu0 %v102
  %v282 = vpop.f32.mrb[0].mxu0
  %v283 = vadd.f32 %v98, %v282
  %v284 = vpop.f32.mrb[0].mxu0
  %285 = vmatprep.mubr.f32.mxu0 0.0
  %286 = vmatmul.mubr.f32.gmra.mrb[0].mxu0 %v105
  %v287 = vpop.f32.mrb[0].mxu0
  %v288 = vadd.f32 %v98, %v287
  %v289 = vpop.f32.mrb[0].mxu0
  %290 = vmatprep.mubr.f32.mxu0 0.0
  %291 = vmatmul.mubr.f32.gmra.mrb[0].mxu0 %v108
  %v292 = vpop.f32.mrb[0].mxu0
  %v293 = vadd.f32 %v98, %v292
  %v294 = vpop.f32.mrb[0].mxu0
  %295 = vmatprep.mubr.f32.mxu0 0.0
  %296 = vmatmul.mubr.f32.gmra.mrb[0].mxu0 %v111
  %v297 = vpop.f32.mrb[0].mxu0
  %v298 = vadd.f32 %v98, %v297
  %v299 = vpop.f32.mrb[0].mxu0
  %300 = vmatprep.mubr.f32.mxu0 0.0
  %301 = vmatmul.mubr.f32.gmra.mrb[0].mxu0 %v114
  %v302 = vpop.f32.mrb[0].mxu0
  %v303 = vadd.f32 %v98, %v302
  %v304 = vpop.f32.mrb[0].mxu0
  %305 = vmatprep.mubr.f32.mxu0 0.0
  %306 = vmatmul.mubr.f32.gmra.mrb[0].mxu0 %v117
  %v307 = vpop.f32.mrb[0].mxu0
  %v308 = vadd.f32 %v98, %v307
  %v309 = vpop.f32.mrb[0].mxu0
  %310 = vmatprep.mubr.f32.mxu0 0.0
  %311 = vmatmul.mubr.f32.gmra.mrb[0].mxu0 %v120
  %v312 = vpop.f32.mrb[0].mxu0
  %v313 = vadd.f32 %v98, %v312
  %v314 = vpop.f32.mrb[0].mxu0
  %315 = vmatprep.mubr.f32.mxu0 0.0
  %316 = vmatmul.mubr.f32.gmra.mrb[0].mxu0 %v123
  %v317 = vpop.f32.mrb[0].mxu0
  %v318 = vadd.f32 %v98, %v317
  %v319 = vpop.f32.mrb[0].mxu0
  %320 = vmatprep.mubr.f32.mxu0 0.0
  %321 = vmatmul.mubr.f32.gmra.mrb[0].mxu0 %v126
  %v322 = vpop.f32.mrb[0].mxu0
  %v323 = vadd.f32 %v98, %v322
  %v324 = vpop.f32.mrb[0].mxu0
  %325 = vmatprep.mubr.f32.mxu0 0.0
  %326 = vmatmul.mubr.f32.gmra.mrb[0].mxu0 %v129
  %v327 = vpop.f32.mrb[0].mxu0
  %v328 = vadd.f32 %v98, %v327
  %v329 = vpop.f32.mrb[0].mxu0
  %330 = vmatprep.mubr.f32.mxu0 0.0
  %331 = vmatmul.mubr.f32.gmra.mrb[0].mxu0 %v132
  %v332 = vpop.f32.mrb[0].mxu0
  %v333 = vadd.f32 %v98, %v332
  %v334 = vpop.f32.mrb[0].mxu0
  %335 = vmatprep.mubr.f32.mxu0 0.0
  %336 = vmatmul.mubr.f32.gmra.mrb[0].mxu0 %v135
  %v337 = vpop.f32.mrb[0].mxu0
  %v338 = vadd.f32 %v98, %v337
  %v339 = vpop.f32.mrb[0].mxu0
  %340 = vmatprep.mubr.f32.mxu0 0.0
  %341 = vmatmul.mubr.f32.gmra.mrb[0].mxu0 %v138
  %v342 = vpop.f32.mrb[0].mxu0
  %v343 = vadd.f32 %v98, %v342
  %v344 = vpop.f32.mrb[0].mxu0
  %345 = vmatprep.mubr.f32.mxu0 0.0
  %346 = vmatmul.mubr.f32.gmra.mrb[0].mxu0 %v141
  %v347 = vpop.f32.mrb[0].mxu0
  %v348 = vadd.f32 %v98, %v347
  %v349 = vpop.f32.mrb[0].mxu0
  %350 = vmatprep.mubr.f32.mxu0 0.0
  %351 = vmatmul.mubr.f32.gmra.mrb[0].mxu0 %v144
  %v352 = vpop.f32.mrb[0].mxu0
  %v353 = vadd.f32 %v98, %v352
  %v354 = vpop.f32.mrb[0].mxu0
  %355 = vmatprep.mubr.f32.mxu0 0.0
  %356 = vmatmul.mubr.f32.gmra.mrb[0].mxu0 %v147
  %v357 = vpop.f32.mrb[0].mxu0
  %v358 = vadd.f32 %v98, %v357
  %v359 = vpop.f32.mrb[0].mxu0
  %360 = vmatprep.mubr.f32.mxu0 0.0
  %361 = vmatmul.mubr.f32.gmra.mrb[0].mxu0 %v150
  %v362 = vpop.f32.mrb[0].mxu0
  %v363 = vadd.f32 %v98, %v362
  %v364 = vpop.f32.mrb[0].mxu0
  %365 = vmatprep.mubr.f32.mxu0 0.0
  %366 = vmatmul.mubr.f32.gmra.mrb[0].mxu0 %v153
  %v367 = vpop.f32.mrb[0].mxu0
  %v368 = vadd.f32 %v98, %v367
  %v369 = vpop.f32.mrb[0].mxu0
  %370 = vmatprep.mubr.f32.mxu0 0.0
  %371 = vmatmul.mubr.f32.gmra.mrb[0].mxu0 %v156
  %v372 = vpop.f32.mrb[0].mxu0
  %v373 = vadd.f32 %v98, %v372
  %v374 = vpop.f32.mrb[0].mxu0
  %375 = vmatprep.mubr.f32.mxu0 0.0
  %376 = vmatmul.mubr.f32.gmra.mrb[0].mxu0 %v159
  %v377 = vpop.f32.mrb[0].mxu0
  %v378 = vadd.f32 %v98, %v377
  %v379 = vpop.f32.mrb[0].mxu0
  %380 = vmatprep.mubr.f32.mxu0 0.0
  %381 = vmatmul.mubr.f32.gmra.mrb[0].mxu0 %v162
  %v382 = vpop.f32.mrb[0].mxu0
  %v383 = vadd.f32 %v98, %v382
  %v384 = vpop.f32.mrb[0].mxu0
  %385 = vmatprep.mubr.f32.mxu0 0.0
  %386 = vmatmul.mubr.f32.gmra.mrb[0].mxu0 %v165
  %v387 = vpop.f32.mrb[0].mxu0
  %v388 = vadd.f32 %v98, %v387
  %v389 = vpop.f32.mrb[0].mxu0
  %390 = vmatprep.mubr.f32.mxu0 0.0
  %391 = vmatmul.mubr.f32.gmra.mrb[0].mxu0 %v168
  %v392 = vpop.f32.mrb[0].mxu0
  %v393 = vadd.f32 %v98, %v392
  %v394 = vpop.f32.mrb[0].mxu0
  %395 = vmatprep.mubr.f32.mxu0 0.0
  %396 = vmatmul.mubr.f32.gmra.mrb[0].mxu0 %v171
  %v397 = vpop.f32.mrb[0].mxu0
  %v398 = vadd.f32 %v98, %v397
  %v399 = vpop.f32.mrb[0].mxu0
  %400 = vmatprep.mubr.f32.mxu0 0.0
  %401 = vmatmul.mubr.f32.gmra.mrb[0].mxu0 %v174
  %v402 = vpop.f32.mrb[0].mxu0
  %v403 = vadd.f32 %v98, %v402
  %v404 = vpop.f32.mrb[0].mxu0
  %405 = vmatprep.mubr.f32.mxu0 0.0
  %406 = vmatmul.mubr.f32.gmra.mrb[0].mxu0 %v177
  %v407 = vpop.f32.mrb[0].mxu0
  %v408 = vadd.f32 %v98, %v407
  %v409 = vpop.f32.mrb[0].mxu0
  %410 = vmatprep.mubr.f32.mxu0 0.0
  %411 = vmatmul.mubr.f32.gmra.mrb[0].mxu0 %v180
  %v412 = vpop.f32.mrb[0].mxu0
  %v413 = vadd.f32 %v98, %v412
  %v414 = vpop.f32.mrb[0].mxu0
  %415 = vmatprep.mubr.f32.mxu0 0.0
  %416 = vmatmul.mubr.f32.gmra.mrb[0].mxu0 %v183
  %v417 = vpop.f32.mrb[0].mxu0
  %v418 = vadd.f32 %v98, %v417
  %v419 = vpop.f32.mrb[0].mxu0
  %420 = vmatprep.mubr.f32.mxu0 0.0
  %421 = vmatmul.mubr.f32.gmra.mrb[0].mxu0 %v186
  %v422 = vpop.f32.mrb[0].mxu0
  %v423 = vadd.f32 %v98, %v422
  %v424 = vpop.f32.mrb[0].mxu0
  %425 = vmatprep.mubr.f32.mxu0 0.0
  %426 = vmatmul.mubr.f32.gmra.mrb[0].mxu0 %v189
  %v427 = vpop.f32.mrb[0].mxu0
  %v428 = vadd.f32 %v98, %v427
  %v429 = vpop.f32.mrb[0].mxu0
  %430 = vmatprep.mubr.f32.mxu0 0.0
  %431 = vmatmul.mubr.f32.gmra.mrb[0].mxu0 %v192
  %v432 = vpop.f32.mrb[0].mxu0
  %v433 = vadd.f32 %v98, %v432
  %v434 = vpop.f32.mrb[0].mxu0
  %435 = vmatprep.mubr.f32.mxu0 0.0
  %436 = vmatmul.mubr.f32.gmra.mrb[0].mxu0 %v195
  %v437 = vpop.f32.mrb[0].mxu0
  %v438 = vadd.f32 %v98, %v437
  %v439 = vpop.f32.mrb[0].mxu0
  %440 = vmatprep.mubr.f32.mxu0 0.0
  %441 = vmatmul.mubr.f32.gmra.mrb[0].mxu0 %v198
  %v442 = vpop.f32.mrb[0].mxu0
  %v443 = vadd.f32 %v98, %v442
  %v444 = vpop.f32.mrb[0].mxu0
  %445 = vmatprep.mubr.f32.mxu0 0.0
  %446 = vmatmul.mubr.f32.gmra.mrb[0].mxu0 %v201
  %v447 = vpop.f32.mrb[0].mxu0
  %v448 = vadd.f32 %v98, %v447
  %v449 = vpop.f32.mrb[0].mxu0
  %450 = vmatprep.mubr.f32.mxu0 0.0
  %451 = vmatmul.mubr.f32.gmra.mrb[0].mxu0 %v204
  %v452 = vpop.f32.mrb[0].mxu0
  %v453 = vadd.f32 %v98, %v452
  %v454 = vpop.f32.mrb[0].mxu0
  %455 = vmatprep.mubr.f32.mxu0 0.0
  %456 = vmatmul.mubr.f32.gmra.mrb[0].mxu0 %v207
  %v457 = vpop.f32.mrb[0].mxu0
  %v458 = vadd.f32 %v98, %v457
  %v459 = vpop.f32.mrb[0].mxu0
  %460 = vmatprep.mubr.f32.mxu0 0.0
  %461 = vmatmul.mubr.f32.gmra.mrb[0].mxu0 %v210
  %v462 = vpop.f32.mrb[0].mxu0
  %v463 = vadd.f32 %v98, %v462
  %v464 = vpop.f32.mrb[0].mxu0
  %465 = vdwg.mxu0
  %v466 = vmax.f32 %v283, 0.0
  %v467 = vmax.f32 %v288, 0.0
  %v468 = vmax.f32 %v293, 0.0
  %v469 = vmax.f32 %v298, 0.0
  %v470 = vmax.f32 %v303, 0.0
  %v471 = vmax.f32 %v308, 0.0
  %v472 = vmax.f32 %v313, 0.0
  %v473 = vmax.f32 %v318, 0.0
  %v474 = vmax.f32 %v323, 0.0
  %v475 = vmax.f32 %v328, 0.0
  %v476 = vmax.f32 %v333, 0.0
  %v477 = vmax.f32 %v338, 0.0
  %v478 = vmax.f32 %v343, 0.0
  %v479 = vmax.f32 %v348, 0.0
  %v480 = vmax.f32 %v353, 0.0
  %v481 = vmax.f32 %v358, 0.0
  %v482 = vmax.f32 %v363, 0.0
  %v483 = vmax.f32 %v368, 0.0
  %v484 = vmax.f32 %v373, 0.0
  %v485 = vmax.f32 %v378, 0.0
  %v486 = vmax.f32 %v383, 0.0
  %v487 = vmax.f32 %v388, 0.0
  %v488 = vmax.f32 %v393, 0.0
  %v489 = vmax.f32 %v398, 0.0
  %v490 = vmax.f32 %v403, 0.0
  %v491 = vmax.f32 %v408, 0.0
  %v492 = vmax.f32 %v413, 0.0
  %v493 = vmax.f32 %v418, 0.0
  %v494 = vmax.f32 %v423, 0.0
  %v495 = vmax.f32 %v428, 0.0
  %v496 = vmax.f32 %v433, 0.0
  %v497 = vmax.f32 %v438, 0.0
  %v498 = vmax.f32 %v443, 0.0
  %v499 = vmax.f32 %v448, 0.0
  %v500 = vmax.f32 %v453, 0.0
  %v501 = vmax.f32 %v458, 0.0
  %v502 = vmax.f32 %v463, 0.0
  %vm503 = vcmask 64512
  %504 = vst.msk [vmem:[%s3] sm:$0xff] %vm503, %v466
  %505 = vst.msk [vmem:[%s3 + $0x8] sm:$0xff] %vm503, %v467
  %506 = vst.msk [vmem:[%s3 + $0x10] sm:$0xff] %vm503, %v468
  %507 = vst.msk [vmem:[%s3 + $0x18] sm:$0xff] %vm503, %v469
  %508 = vst.msk [vmem:[%s3 + $0x20] sm:$0xff] %vm503, %v470
  %509 = vst.msk [vmem:[%s3 + $0x28] sm:$0xff] %vm503, %v471
  %510 = vst.msk [vmem:[%s3 + $0x30] sm:$0xff] %vm503, %v472
  %511 = vst.msk [vmem:[%s3 + $0x38] sm:$0xff] %vm503, %v473
  %512 = vst.msk [vmem:[%s3 + $0x40] sm:$0xff] %vm503, %v474
  %513 = vst.msk [vmem:[%s3 + $0x48] sm:$0xff] %vm503, %v475
  %514 = vst.msk [vmem:[%s3 + $0x50] sm:$0xff] %vm503, %v476
  %515 = vst.msk [vmem:[%s3 + $0x58] sm:$0xff] %vm503, %v477
  %516 = vst.msk [vmem:[%s3 + $0x60] sm:$0xff] %vm503, %v478
  %517 = vst.msk [vmem:[%s3 + $0x68] sm:$0xff] %vm503, %v479
  %518 = vst.msk [vmem:[%s3 + $0x70] sm:$0xff] %vm503, %v480
  %519 = vst.msk [vmem:[%s3 + $0x78] sm:$0xff] %vm503, %v481
  %520 = vst.msk [vmem:[%s3 + $0x80] sm:$0xff] %vm503, %v482
  %521 = vst.msk [vmem:[%s3 + $0x88] sm:$0xff] %vm503, %v483
  %522 = vst.msk [vmem:[%s3 + $0x90] sm:$0xff] %vm503, %v484
  %523 = vst.msk [vmem:[%s3 + $0x98] sm:$0xff] %vm503, %v485
  %524 = vst.msk [vmem:[%s3 + $0xa0] sm:$0xff] %vm503, %v486
  %525 = vst.msk [vmem:[%s3 + $0xa8] sm:$0xff] %vm503, %v487
  %526 = vst.msk [vmem:[%s3 + $0xb0] sm:$0xff] %vm503, %v488
  %527 = vst.msk [vmem:[%s3 + $0xb8] sm:$0xff] %vm503, %v489
  %528 = vst.msk [vmem:[%s3 + $0xc0] sm:$0xff] %vm503, %v490
  %529 = vst.msk [vmem:[%s3 + $0xc8] sm:$0xff] %vm503, %v491
  %530 = vst.msk [vmem:[%s3 + $0xd0] sm:$0xff] %vm503, %v492
  %531 = vst.msk [vmem:[%s3 + $0xd8] sm:$0xff] %vm503, %v493
  %532 = vst.msk [vmem:[%s3 + $0xe0] sm:$0xff] %vm503, %v494
  %533 = vst.msk [vmem:[%s3 + $0xe8] sm:$0xff] %vm503, %v495
  %534 = vst.msk [vmem:[%s3 + $0xf0] sm:$0xff] %vm503, %v496
  %535 = vst.msk [vmem:[%s3 + $0xf8] sm:$0xff] %vm503, %v497
  %536 = vst.msk [vmem:[%s3 + $0x100] sm:$0xff] %vm503, %v498
  %537 = vst.msk [vmem:[%s3 + $0x108] sm:$0xff] %vm503, %v499
  %538 = vst.msk [vmem:[%s3 + $0x110] sm:$0xff] %vm503, %v500
  %539 = vst.msk [vmem:[%s3 + $0x118] sm:$0xff] %vm503, %v501
  %vm540 = vcmask 62464
  %541 = vst.msk [vmem:[%s3 + $0x120] sm:$0x3f] %vm540, %v502
  // Predicated region
  $region14: #{domain_specific_visual_forward.3} parent=0 // pred_check
    _
  $region15: #{domain_specific_visual_forward.3} parent=0 // pred_check_branch
    %543 = sbr.rel (0) target = $region17
  $region16: #{domain_specific_visual_forward.3} parent=0 // pred_region
    _
  $region17: #{domain_specific_visual_forward.3} parent=0 // pred_fallthru
    _
  // Predicated region
  $region18: #{domain_specific_visual_forward.3} parent=0 // pred_check
    _
  $region19: #{domain_specific_visual_forward.3} parent=0 // pred_check_branch
    %545 = sbr.rel (0) target = $region21
  $region20: #{domain_specific_visual_forward.3} parent=0 // pred_region
    _
  $region21: #{domain_specific_visual_forward.3} parent=0 // pred_fallthru
    _

// kernel: domain_specific_visual_forward.4
$region0: #{domain_specific_visual_forward.4}
  #allocation0 [shape = 'u32[]', space=smem, size = 0x4, offset = 0x4, fixed_abs, tag = 'smem constant byte address 0x4 - core index']
  #allocation1 [shape = 'u32[144,128]{1,0:T(1,128)}', space=vmem, size = 0x12000, scoped, tag = 'internal scratch']
  %s0 = inlined_call_operand.vmem [shape: f32[150,72], index: 0, kind: input, shape index: {}]
  %s1 = inlined_call_operand.vmem [shape: f32[72,8], index: 1, kind: input, shape index: {}]
  %s2 = inlined_call_operand.vmem [shape: f32[1,8], index: 2, kind: input, shape index: {}]
  %s3 = inlined_call_operand.vmem [shape: f32[150,8], index: 3, kind: output, shape index: {}]
  %s4 = sld [smem:[#allocation0]]
  $region22: #{domain_specific_visual_forward.4} parent=0
    _
  %s6 = ssub.s32 1, %s4
  %s7 = scalar_select 0, %s6, %s4
  // Predicated region
  $region2: #{domain_specific_visual_forward.4} parent=0 // pred_check
    _
  $region3: #{domain_specific_visual_forward.4} parent=0 // pred_check_branch
    %9 = sbr.rel (0) target = $region5
  $region4: #{domain_specific_visual_forward.4} parent=0 // pred_region
    _
  $region5: #{domain_specific_visual_forward.4} parent=0 // pred_fallthru
    _
  // Predicated region
  $region6: #{domain_specific_visual_forward.4} parent=0 // pred_check
    _
  $region7: #{domain_specific_visual_forward.4} parent=0 // pred_check_branch
    %11 = sbr.rel (0) target = $region9
  $region8: #{domain_specific_visual_forward.4} parent=0 // pred_region
    _
  $region9: #{domain_specific_visual_forward.4} parent=0 // pred_fallthru
    _
  // Predicated region
  $region10: #{domain_specific_visual_forward.4} parent=0 // pred_check
    _
  $region11: #{domain_specific_visual_forward.4} parent=0 // pred_check_branch
    %13 = sbr.rel (0) target = $region13
  $region12: #{domain_specific_visual_forward.4} parent=0 // pred_region
    _
  $region13: #{domain_specific_visual_forward.4} parent=0 // pred_fallthru
    _
  %v14 = vld [vmem:[%s0] sm:$0xff]
  %v15 = vld [vmem:[%s0 + $0x8] sm:$0xff]
  %v16 = vld [vmem:[%s0 + $0x10] sm:$0xff]
  %v17 = vld [vmem:[%s0 + $0x18] sm:$0xff]
  %v18 = vld [vmem:[%s0 + $0x20] sm:$0xff]
  %v19 = vld [vmem:[%s0 + $0x28] sm:$0xff]
  %v20 = vld [vmem:[%s0 + $0x30] sm:$0xff]
  %v21 = vld [vmem:[%s0 + $0x38] sm:$0xff]
  %v22 = vld [vmem:[%s0 + $0x40] sm:$0xff]
  %v23 = vld [vmem:[%s0 + $0x48] sm:$0xff]
  %v24 = vld [vmem:[%s0 + $0x50] sm:$0xff]
  %v25 = vld [vmem:[%s0 + $0x58] sm:$0xff]
  %v26 = vld [vmem:[%s0 + $0x60] sm:$0xff]
  %v27 = vld [vmem:[%s0 + $0x68] sm:$0xff]
  %v28 = vld [vmem:[%s0 + $0x70] sm:$0xff]
  %v29 = vld [vmem:[%s0 + $0x78] sm:$0xff]
  %v30 = vld [vmem:[%s0 + $0x80] sm:$0xff]
  %v31 = vld [vmem:[%s0 + $0x88] sm:$0xff]
  %v32 = vld [vmem:[%s0 + $0x90] sm:$0x3f]
  %v33 = vld [vmem:[%s1] sm:$0xff]
  %v34 = vld [vmem:[%s1 + $0x8] sm:$0xff]
  %v35 = vld [vmem:[%s1 + $0x10] sm:$0xff]
  %v36 = vld [vmem:[%s1 + $0x18] sm:$0xff]
  %v37 = vld [vmem:[%s1 + $0x20] sm:$0xff]
  %v38 = vld [vmem:[%s1 + $0x28] sm:$0xff]
  %v39 = vld [vmem:[%s1 + $0x30] sm:$0xff]
  %v40 = vld [vmem:[%s1 + $0x38] sm:$0xff]
  %v41 = vld [vmem:[%s1 + $0x40] sm:$0xff]
  %v42 = vld [vmem:[%s2] sm:$0x1]
  %v44 = vlaneseq
  %v45 = vshrl.u32 %v44, 7
  %v46 = vsub.s32 0, %v45
  %v47 = vrot.slane %v42, %v46
  %vm49 = vcmask 588800
  %v51 = vsel %vm49, %v14, 0
  %v54 = vsel %vm49, %v15, 0
  %v57 = vsel %vm49, %v16, 0
  %v60 = vsel %vm49, %v17, 0
  %v63 = vsel %vm49, %v18, 0
  %v66 = vsel %vm49, %v19, 0
  %v69 = vsel %vm49, %v20, 0
  %v72 = vsel %vm49, %v21, 0
  %v75 = vsel %vm49, %v22, 0
  %v78 = vsel %vm49, %v23, 0
  %v81 = vsel %vm49, %v24, 0
  %v84 = vsel %vm49, %v25, 0
  %v87 = vsel %vm49, %v26, 0
  %v90 = vsel %vm49, %v27, 0
  %v93 = vsel %vm49, %v28, 0
  %v96 = vsel %vm49, %v29, 0
  %v99 = vsel %vm49, %v30, 0
  %v102 = vsel %vm49, %v31, 0
  %v105 = vsel %vm49, %v32, 0
  %107 = vmatprep.subr.mxu0 0.0
  %108 = vmatpush1.msra.mxu0 %v33
  %109 = vmatprep.subr.mxu0 0.0
  %110 = vmatpush1.msra.mxu0 %v34
  %111 = vmatprep.subr.mxu0 0.0
  %112 = vmatpush1.msra.mxu0 %v35
  %113 = vmatprep.subr.mxu0 0.0
  %114 = vmatpush1.msra.mxu0 %v36
  %115 = vmatprep.subr.mxu0 0.0
  %116 = vmatpush1.msra.mxu0 %v37
  %117 = vmatprep.subr.mxu0 0.0
  %118 = vmatpush1.msra.mxu0 %v38
  %119 = vmatprep.subr.mxu0 0.0
  %120 = vmatpush1.msra.mxu0 %v39
  %121 = vmatprep.subr.mxu0 0.0
  %122 = vmatpush1.msra.mxu0 %v40
  %123 = vmatprep.subr.mxu0 0.0
  %124 = vmatpush1.msra.mxu0 %v41
  %125 = vmatprep.subr.mxu0 0.0
  %126 = vmatpush1.msra.mxu0 0.0
  %127 = vmatprep.subr.mxu0 0.0
  %128 = vmatpush1.msra.mxu0 0.0
  %129 = vmatprep.subr.mxu0 0.0
  %130 = vmatpush1.msra.mxu0 0.0
  %131 = vmatprep.subr.mxu0 0.0
  %132 = vmatpush1.msra.mxu0 0.0
  %133 = vmatprep.subr.mxu0 0.0
  %134 = vmatpush1.msra.mxu0 0.0
  %135 = vmatprep.subr.mxu0 0.0
  %136 = vmatpush1.msra.mxu0 0.0
  %137 = vmatprep.subr.mxu0 0.0
  %138 = vmatpush1.msra.mxu0 0.0
  %139 = vmatprep.subr.mxu0 0.0
  %140 = vmatpush1.msra.mxu0 0.0
  %141 = vmatprep.subr.mxu0 0.0
  %142 = vmatpush1.msra.mxu0 0.0
  %143 = vmatprep.subr.mxu0 0.0
  %144 = vmatpush1.msra.mxu0 0.0
  %145 = vmatprep.subr.mxu0 0.0
  %146 = vmatpush1.msra.mxu0 0.0
  %147 = vmatprep.subr.mxu0 0.0
  %148 = vmatpush1.msra.mxu0 0.0
  %149 = vmatprep.subr.mxu0 0.0
  %150 = vmatpush1.msra.mxu0 0.0
  %151 = vmatprep.subr.mxu0 0.0
  %152 = vmatpush1.msra.mxu0 0.0
  %153 = vmatprep.subr.mxu0 0.0
  %154 = vmatpush1.msra.mxu0 0.0
  %155 = vmatprep.subr.mxu0 0.0
  %156 = vmatpush1.msra.mxu0 0.0
  %157 = vmatprep.subr.mxu0 0.0
  %158 = vmatpush1.msra.mxu0 0.0
  %159 = vmatprep.subr.mxu0 0.0
  %160 = vmatpush1.msra.mxu0 0.0
  %161 = vmatprep.subr.mxu0 0.0
  %162 = vmatpush1.msra.mxu0 0.0
  %163 = vmatprep.subr.mxu0 0.0
  %164 = vmatpush1.msra.mxu0 0.0
  %165 = vmatprep.subr.mxu0 0.0
  %166 = vmatpush1.msra.mxu0 0.0
  %167 = vmatprep.subr.mxu0 0.0
  %168 = vmatpush1.msra.mxu0 0.0
  %169 = vmatprep.subr.mxu0 0.0
  %170 = vmatpush1.msra.mxu0 0.0
  %171 = vmatprep.mubr.f32.mxu0 0.0
  %172 = vmatmul.mubr.f32.gmra.mrb[0].mxu0 %v51
  %v173 = vpop.f32.mrb[0].mxu0
  %v174 = vadd.f32 %v47, %v173
  %v175 = vpop.f32.mrb[0].mxu0
  %176 = vmatprep.mubr.f32.mxu0 0.0
  %177 = vmatmul.mubr.f32.gmra.mrb[0].mxu0 %v54
  %v178 = vpop.f32.mrb[0].mxu0
  %v179 = vadd.f32 %v47, %v178
  %v180 = vpop.f32.mrb[0].mxu0
  %181 = vmatprep.mubr.f32.mxu0 0.0
  %182 = vmatmul.mubr.f32.gmra.mrb[0].mxu0 %v57
  %v183 = vpop.f32.mrb[0].mxu0
  %v184 = vadd.f32 %v47, %v183
  %v185 = vpop.f32.mrb[0].mxu0
  %186 = vmatprep.mubr.f32.mxu0 0.0
  %187 = vmatmul.mubr.f32.gmra.mrb[0].mxu0 %v60
  %v188 = vpop.f32.mrb[0].mxu0
  %v189 = vadd.f32 %v47, %v188
  %v190 = vpop.f32.mrb[0].mxu0
  %191 = vmatprep.mubr.f32.mxu0 0.0
  %192 = vmatmul.mubr.f32.gmra.mrb[0].mxu0 %v63
  %v193 = vpop.f32.mrb[0].mxu0
  %v194 = vadd.f32 %v47, %v193
  %v195 = vpop.f32.mrb[0].mxu0
  %196 = vmatprep.mubr.f32.mxu0 0.0
  %197 = vmatmul.mubr.f32.gmra.mrb[0].mxu0 %v66
  %v198 = vpop.f32.mrb[0].mxu0
  %v199 = vadd.f32 %v47, %v198
  %v200 = vpop.f32.mrb[0].mxu0
  %201 = vmatprep.mubr.f32.mxu0 0.0
  %202 = vmatmul.mubr.f32.gmra.mrb[0].mxu0 %v69
  %v203 = vpop.f32.mrb[0].mxu0
  %v204 = vadd.f32 %v47, %v203
  %v205 = vpop.f32.mrb[0].mxu0
  %206 = vmatprep.mubr.f32.mxu0 0.0
  %207 = vmatmul.mubr.f32.gmra.mrb[0].mxu0 %v72
  %v208 = vpop.f32.mrb[0].mxu0
  %v209 = vadd.f32 %v47, %v208
  %v210 = vpop.f32.mrb[0].mxu0
  %211 = vmatprep.mubr.f32.mxu0 0.0
  %212 = vmatmul.mubr.f32.gmra.mrb[0].mxu0 %v75
  %v213 = vpop.f32.mrb[0].mxu0
  %v214 = vadd.f32 %v47, %v213
  %v215 = vpop.f32.mrb[0].mxu0
  %216 = vmatprep.mubr.f32.mxu0 0.0
  %217 = vmatmul.mubr.f32.gmra.mrb[0].mxu0 %v78
  %v218 = vpop.f32.mrb[0].mxu0
  %v219 = vadd.f32 %v47, %v218
  %v220 = vpop.f32.mrb[0].mxu0
  %221 = vmatprep.mubr.f32.mxu0 0.0
  %222 = vmatmul.mubr.f32.gmra.mrb[0].mxu0 %v81
  %v223 = vpop.f32.mrb[0].mxu0
  %v224 = vadd.f32 %v47, %v223
  %v225 = vpop.f32.mrb[0].mxu0
  %226 = vmatprep.mubr.f32.mxu0 0.0
  %227 = vmatmul.mubr.f32.gmra.mrb[0].mxu0 %v84
  %v228 = vpop.f32.mrb[0].mxu0
  %v229 = vadd.f32 %v47, %v228
  %v230 = vpop.f32.mrb[0].mxu0
  %231 = vmatprep.mubr.f32.mxu0 0.0
  %232 = vmatmul.mubr.f32.gmra.mrb[0].mxu0 %v87
  %v233 = vpop.f32.mrb[0].mxu0
  %v234 = vadd.f32 %v47, %v233
  %v235 = vpop.f32.mrb[0].mxu0
  %236 = vmatprep.mubr.f32.mxu0 0.0
  %237 = vmatmul.mubr.f32.gmra.mrb[0].mxu0 %v90
  %v238 = vpop.f32.mrb[0].mxu0
  %v239 = vadd.f32 %v47, %v238
  %v240 = vpop.f32.mrb[0].mxu0
  %241 = vmatprep.mubr.f32.mxu0 0.0
  %242 = vmatmul.mubr.f32.gmra.mrb[0].mxu0 %v93
  %v243 = vpop.f32.mrb[0].mxu0
  %v244 = vadd.f32 %v47, %v243
  %v245 = vpop.f32.mrb[0].mxu0
  %246 = vmatprep.mubr.f32.mxu0 0.0
  %247 = vmatmul.mubr.f32.gmra.mrb[0].mxu0 %v96
  %v248 = vpop.f32.mrb[0].mxu0
  %v249 = vadd.f32 %v47, %v248
  %v250 = vpop.f32.mrb[0].mxu0
  %251 = vmatprep.mubr.f32.mxu0 0.0
  %252 = vmatmul.mubr.f32.gmra.mrb[0].mxu0 %v99
  %v253 = vpop.f32.mrb[0].mxu0
  %v254 = vadd.f32 %v47, %v253
  %v255 = vpop.f32.mrb[0].mxu0
  %256 = vmatprep.mubr.f32.mxu0 0.0
  %257 = vmatmul.mubr.f32.gmra.mrb[0].mxu0 %v102
  %v258 = vpop.f32.mrb[0].mxu0
  %v259 = vadd.f32 %v47, %v258
  %v260 = vpop.f32.mrb[0].mxu0
  %261 = vmatprep.mubr.f32.mxu0 0.0
  %262 = vmatmul.mubr.f32.gmra.mrb[0].mxu0 %v105
  %v263 = vpop.f32.mrb[0].mxu0
  %v264 = vadd.f32 %v47, %v263
  %v265 = vpop.f32.mrb[0].mxu0
  %266 = vdwg.mxu0
  %v267 = vmax.f32 %v174, 0.0
  %v268 = vmax.f32 %v179, 0.0
  %v269 = vmax.f32 %v184, 0.0
  %v270 = vmax.f32 %v189, 0.0
  %v271 = vmax.f32 %v194, 0.0
  %v272 = vmax.f32 %v199, 0.0
  %v273 = vmax.f32 %v204, 0.0
  %v274 = vmax.f32 %v209, 0.0
  %v275 = vmax.f32 %v214, 0.0
  %v276 = vmax.f32 %v219, 0.0
  %v277 = vmax.f32 %v224, 0.0
  %v278 = vmax.f32 %v229, 0.0
  %v279 = vmax.f32 %v234, 0.0
  %v280 = vmax.f32 %v239, 0.0
  %v281 = vmax.f32 %v244, 0.0
  %v282 = vmax.f32 %v249, 0.0
  %v283 = vmax.f32 %v254, 0.0
  %v284 = vmax.f32 %v259, 0.0
  %v285 = vmax.f32 %v264, 0.0
  %vm286 = vcmask 64512
  %287 = vst.msk [vmem:[%s3] sm:$0xff] %vm286, %v267
  %288 = vst.msk [vmem:[%s3 + $0x8] sm:$0xff] %vm286, %v268
  %289 = vst.msk [vmem:[%s3 + $0x10] sm:$0xff] %vm286, %v269
  %290 = vst.msk [vmem:[%s3 + $0x18] sm:$0xff] %vm286, %v270
  %291 = vst.msk [vmem:[%s3 + $0x20] sm:$0xff] %vm286, %v271
  %292 = vst.msk [vmem:[%s3 + $0x28] sm:$0xff] %vm286, %v272
  %293 = vst.msk [vmem:[%s3 + $0x30] sm:$0xff] %vm286, %v273
  %294 = vst.msk [vmem:[%s3 + $0x38] sm:$0xff] %vm286, %v274
  %295 = vst.msk [vmem:[%s3 + $0x40] sm:$0xff] %vm286, %v275
  %296 = vst.msk [vmem:[%s3 + $0x48] sm:$0xff] %vm286, %v276
  %297 = vst.msk [vmem:[%s3 + $0x50] sm:$0xff] %vm286, %v277
  %298 = vst.msk [vmem:[%s3 + $0x58] sm:$0xff] %vm286, %v278
  %299 = vst.msk [vmem:[%s3 + $0x60] sm:$0xff] %vm286, %v279
  %300 = vst.msk [vmem:[%s3 + $0x68] sm:$0xff] %vm286, %v280
  %301 = vst.msk [vmem:[%s3 + $0x70] sm:$0xff] %vm286, %v281
  %302 = vst.msk [vmem:[%s3 + $0x78] sm:$0xff] %vm286, %v282
  %303 = vst.msk [vmem:[%s3 + $0x80] sm:$0xff] %vm286, %v283
  %304 = vst.msk [vmem:[%s3 + $0x88] sm:$0xff] %vm286, %v284
  %vm305 = vcmask 62464
  %306 = vst.msk [vmem:[%s3 + $0x90] sm:$0x3f] %vm305, %v285
  // Predicated region
  $region14: #{domain_specific_visual_forward.4} parent=0 // pred_check
    _
  $region15: #{domain_specific_visual_forward.4} parent=0 // pred_check_branch
    %308 = sbr.rel (0) target = $region17
  $region16: #{domain_specific_visual_forward.4} parent=0 // pred_region
    _
  $region17: #{domain_specific_visual_forward.4} parent=0 // pred_fallthru
    _
  // Predicated region
  $region18: #{domain_specific_visual_forward.4} parent=0 // pred_check
    _
  $region19: #{domain_specific_visual_forward.4} parent=0 // pred_check_branch
    %310 = sbr.rel (0) target = $region21
  $region20: #{domain_specific_visual_forward.4} parent=0 // pred_region
    _
  $region21: #{domain_specific_visual_forward.4} parent=0 // pred_fallthru
    _

// kernel: domain_specific_visual_forward.5
$region0: #{domain_specific_visual_forward.5}
  #allocation0 [shape = 'u32[]', space=smem, size = 0x4, offset = 0x4, fixed_abs, tag = 'smem constant byte address 0x4 - core index']
  #allocation1 [shape = 'u32[144,128]{1,0:T(1,128)}', space=vmem, size = 0x12000, scoped, tag = 'internal scratch']
  %s0 = inlined_call_operand.vmem [shape: f32[6,200], index: 0, kind: input, shape index: {}]
  %s1 = inlined_call_operand.vmem [shape: f32[200,32], index: 1, kind: input, shape index: {}]
  %s2 = inlined_call_operand.vmem [shape: f32[1,32], index: 2, kind: input, shape index: {}]
  %s3 = inlined_call_operand.vmem [shape: f32[1,32], index: 3, kind: input, shape index: {}]
  %s4 = inlined_call_operand.vmem [shape: f32[1,32], index: 4, kind: input, shape index: {}]
  %s5 = inlined_call_operand.vmem [shape: f32[2,3], index: 5, kind: input, shape index: {}]
  %s6 = inlined_call_operand.vmem [shape: f32[2,3], index: 6, kind: input, shape index: {}]
  %s7 = inlined_call_operand.vmem [shape: f32[32,20], index: 7, kind: input, shape index: {}]
  %s8 = inlined_call_operand.vmem [shape: f32[3,20], index: 8, kind: input, shape index: {}]
  %s9 = inlined_call_operand.vmem [shape: f32[32,20], index: 9, kind: input, shape index: {}]
  %s10 = inlined_call_operand.vmem [shape: f32[3,20], index: 10, kind: input, shape index: {}]
  %s11 = inlined_call_operand.vmem [shape: f32[32,20], index: 11, kind: input, shape index: {}]
  %s12 = inlined_call_operand.vmem [shape: f32[1,20], index: 12, kind: input, shape index: {}]
  %s13 = inlined_call_operand.vmem [shape: f32[20,20], index: 13, kind: input, shape index: {}]
  %s14 = inlined_call_operand.vmem [shape: f32[1,20], index: 14, kind: input, shape index: {}]
  %s15 = inlined_call_operand.vmem [shape: f32[20,16], index: 15, kind: input, shape index: {}]
  %s16 = inlined_call_operand.vmem [shape: f32[1,16], index: 16, kind: input, shape index: {}]
  %s17 = inlined_call_operand.hbm [shape: f32[2,16], index: 17, kind: output, shape index: {}]
  %s18 = sld [smem:[#allocation0]]
  $region78: #{domain_specific_visual_forward.5} parent=0
    _
  %s20 = ssub.s32 1, %s18
  %s21 = scalar_select 0, %s20, %s18
  $region1: #{domain_specific_visual_forward.5} parent=0
    #allocation2 [shape = 'u8[1024]{0}', space=vmem, size = 0x400, scoped, tag = 'output window, operand 0, single buffered']
    #allocation3 [shape = 's32[1]{0}', space=sflag, size = 0x4, scoped, tag = 'scoped memory for domain_specific_visual_forward.5']
    %22 = vsyncpa [#allocation3], 0
    // Predicated region
    $region2: #{domain_specific_visual_forward.5} parent=1 // pred_check
      _
    $region3: #{domain_specific_visual_forward.5} parent=1 // pred_check_branch
      %24 = sbr.rel (0) target = $region5
    $region4: #{domain_specific_visual_forward.5} parent=1 // pred_region
      _
    $region5: #{domain_specific_visual_forward.5} parent=1 // pred_fallthru
      _
    // Predicated region
    $region6: #{domain_specific_visual_forward.5} parent=1 // pred_check
      _
    $region7: #{domain_specific_visual_forward.5} parent=1 // pred_check_branch
      %26 = sbr.rel (0) target = $region9
    $region8: #{domain_specific_visual_forward.5} parent=1 // pred_region
      _
    $region9: #{domain_specific_visual_forward.5} parent=1 // pred_fallthru
      _
    // Predicated region
    $region10: #{domain_specific_visual_forward.5} parent=1 // pred_check
      _
    $region11: #{domain_specific_visual_forward.5} parent=1 // pred_check_branch
      %28 = sbr.rel (0) target = $region13
    $region12: #{domain_specific_visual_forward.5} parent=1 // pred_region
      _
    $region13: #{domain_specific_visual_forward.5} parent=1 // pred_fallthru
      _
    // Predicated region
    $region14: #{domain_specific_visual_forward.5} parent=1 // pred_check
      _
    $region15: #{domain_specific_visual_forward.5} parent=1 // pred_check_branch
      %30 = sbr.rel (0) target = $region17
    $region16: #{domain_specific_visual_forward.5} parent=1 // pred_region
      _
    $region17: #{domain_specific_visual_forward.5} parent=1 // pred_fallthru
      _
    // Predicated region
    $region18: #{domain_specific_visual_forward.5} parent=1 // pred_check
      _
    $region19: #{domain_specific_visual_forward.5} parent=1 // pred_check_branch
      %32 = sbr.rel (0) target = $region21
    $region20: #{domain_specific_visual_forward.5} parent=1 // pred_region
      _
    $region21: #{domain_specific_visual_forward.5} parent=1 // pred_fallthru
      _
    // Predicated region
    $region22: #{domain_specific_visual_forward.5} parent=1 // pred_check
      _
    $region23: #{domain_specific_visual_forward.5} parent=1 // pred_check_branch
      %34 = sbr.rel (0) target = $region25
    $region24: #{domain_specific_visual_forward.5} parent=1 // pred_region
      _
    $region25: #{domain_specific_visual_forward.5} parent=1 // pred_fallthru
      _
    // Predicated region
    $region26: #{domain_specific_visual_forward.5} parent=1 // pred_check
      _
    $region27: #{domain_specific_visual_forward.5} parent=1 // pred_check_branch
      %36 = sbr.rel (0) target = $region29
    $region28: #{domain_specific_visual_forward.5} parent=1 // pred_region
      _
    $region29: #{domain_specific_visual_forward.5} parent=1 // pred_fallthru
      _
    // Predicated region
    $region30: #{domain_specific_visual_forward.5} parent=1 // pred_check
      _
    $region31: #{domain_specific_visual_forward.5} parent=1 // pred_check_branch
      %38 = sbr.rel (0) target = $region33
    $region32: #{domain_specific_visual_forward.5} parent=1 // pred_region
      _
    $region33: #{domain_specific_visual_forward.5} parent=1 // pred_fallthru
      _
    // Predicated region
    $region34: #{domain_specific_visual_forward.5} parent=1 // pred_check
      _
    $region35: #{domain_specific_visual_forward.5} parent=1 // pred_check_branch
      %40 = sbr.rel (0) target = $region37
    $region36: #{domain_specific_visual_forward.5} parent=1 // pred_region
      _
    $region37: #{domain_specific_visual_forward.5} parent=1 // pred_fallthru
      _
    // Predicated region
    $region38: #{domain_specific_visual_forward.5} parent=1 // pred_check
      _
    $region39: #{domain_specific_visual_forward.5} parent=1 // pred_check_branch
      %42 = sbr.rel (0) target = $region41
    $region40: #{domain_specific_visual_forward.5} parent=1 // pred_region
      _
    $region41: #{domain_specific_visual_forward.5} parent=1 // pred_fallthru
      _
    // Predicated region
    $region42: #{domain_specific_visual_forward.5} parent=1 // pred_check
      _
    $region43: #{domain_specific_visual_forward.5} parent=1 // pred_check_branch
      %44 = sbr.rel (0) target = $region45
    $region44: #{domain_specific_visual_forward.5} parent=1 // pred_region
      _
    $region45: #{domain_specific_visual_forward.5} parent=1 // pred_fallthru
      _
    // Predicated region
    $region46: #{domain_specific_visual_forward.5} parent=1 // pred_check
      _
    $region47: #{domain_specific_visual_forward.5} parent=1 // pred_check_branch
      %46 = sbr.rel (0) target = $region49
    $region48: #{domain_specific_visual_forward.5} parent=1 // pred_region
      _
    $region49: #{domain_specific_visual_forward.5} parent=1 // pred_fallthru
      _
    // Predicated region
    $region50: #{domain_specific_visual_forward.5} parent=1 // pred_check
      _
    $region51: #{domain_specific_visual_forward.5} parent=1 // pred_check_branch
      %48 = sbr.rel (0) target = $region53
    $region52: #{domain_specific_visual_forward.5} parent=1 // pred_region
      _
    $region53: #{domain_specific_visual_forward.5} parent=1 // pred_fallthru
      _
    // Predicated region
    $region54: #{domain_specific_visual_forward.5} parent=1 // pred_check
      _
    $region55: #{domain_specific_visual_forward.5} parent=1 // pred_check_branch
      %50 = sbr.rel (0) target = $region57
    $region56: #{domain_specific_visual_forward.5} parent=1 // pred_region
      _
    $region57: #{domain_specific_visual_forward.5} parent=1 // pred_fallthru
      _
    // Predicated region
    $region58: #{domain_specific_visual_forward.5} parent=1 // pred_check
      _
    $region59: #{domain_specific_visual_forward.5} parent=1 // pred_check_branch
      %52 = sbr.rel (0) target = $region61
    $region60: #{domain_specific_visual_forward.5} parent=1 // pred_region
      _
    $region61: #{domain_specific_visual_forward.5} parent=1 // pred_fallthru
      _
    // Predicated region
    $region62: #{domain_specific_visual_forward.5} parent=1 // pred_check
      _
    $region63: #{domain_specific_visual_forward.5} parent=1 // pred_check_branch
      %54 = sbr.rel (0) target = $region65
    $region64: #{domain_specific_visual_forward.5} parent=1 // pred_region
      _
    $region65: #{domain_specific_visual_forward.5} parent=1 // pred_fallthru
      _
    // Predicated region
    $region66: #{domain_specific_visual_forward.5} parent=1 // pred_check
      _
    $region67: #{domain_specific_visual_forward.5} parent=1 // pred_check_branch
      %56 = sbr.rel (0) target = $region69
    $region68: #{domain_specific_visual_forward.5} parent=1 // pred_region
      _
    $region69: #{domain_specific_visual_forward.5} parent=1 // pred_fallthru
      _
    %v57 = vld [vmem:[%s0] sm:$0x3f]
    %v58 = vld [vmem:[%s0 + $0x8] sm:$0x3f]
    %v59 = vld [vmem:[%s1] sm:$0xff]
    %v60 = vld [vmem:[%s1 + $0x8] sm:$0xff]
    %v61 = vld [vmem:[%s1 + $0x10] sm:$0xff]
    %v62 = vld [vmem:[%s1 + $0x18] sm:$0xff]
    %v63 = vld [vmem:[%s1 + $0x20] sm:$0xff]
    %v64 = vld [vmem:[%s1 + $0x28] sm:$0xff]
    %v65 = vld [vmem:[%s1 + $0x30] sm:$0xff]
    %v66 = vld [vmem:[%s1 + $0x38] sm:$0xff]
    %v67 = vld [vmem:[%s1 + $0x40] sm:$0xff]
    %v68 = vld [vmem:[%s1 + $0x48] sm:$0xff]
    %v69 = vld [vmem:[%s1 + $0x50] sm:$0xff]
    %v70 = vld [vmem:[%s1 + $0x58] sm:$0xff]
    %v71 = vld [vmem:[%s1 + $0x60] sm:$0xff]
    %v72 = vld [vmem:[%s1 + $0x68] sm:$0xff]
    %v73 = vld [vmem:[%s1 + $0x70] sm:$0xff]
    %v74 = vld [vmem:[%s1 + $0x78] sm:$0xff]
    %v75 = vld [vmem:[%s1 + $0x80] sm:$0xff]
    %v76 = vld [vmem:[%s1 + $0x88] sm:$0xff]
    %v77 = vld [vmem:[%s1 + $0x90] sm:$0xff]
    %v78 = vld [vmem:[%s1 + $0x98] sm:$0xff]
    %v79 = vld [vmem:[%s1 + $0xa0] sm:$0xff]
    %v80 = vld [vmem:[%s1 + $0xa8] sm:$0xff]
    %v81 = vld [vmem:[%s1 + $0xb0] sm:$0xff]
    %v82 = vld [vmem:[%s1 + $0xb8] sm:$0xff]
    %v83 = vld [vmem:[%s1 + $0xc0] sm:$0xff]
    %v84 = vld [vmem:[%s2] sm:$0x1]
    %v86 = vlaneseq
    %v87 = vshrl.u32 %v86, 7
    %v88 = vsub.s32 0, %v87
    %v89 = vrot.slane %v84, %v88
    %vm91 = vcmask 588800
    %v93 = vsel %vm91, %v58, 0
    %95 = vmatprep.subr.mxu0 0.0
    %96 = vmatpush1.msra.mxu0 %v59
    %97 = vmatprep.subr.mxu0 0.0
    %98 = vmatpush1.msra.mxu0 %v60
    %99 = vmatprep.subr.mxu0 0.0
    %100 = vmatpush1.msra.mxu0 %v61
    %101 = vmatprep.subr.mxu0 0.0
    %102 = vmatpush1.msra.mxu0 %v62
    %103 = vmatprep.subr.mxu0 0.0
    %104 = vmatpush1.msra.mxu0 %v63
    %105 = vmatprep.subr.mxu0 0.0
    %106 = vmatpush1.msra.mxu0 %v64
    %107 = vmatprep.subr.mxu0 0.0
    %108 = vmatpush1.msra.mxu0 %v65
    %109 = vmatprep.subr.mxu0 0.0
    %110 = vmatpush1.msra.mxu0 %v66
    %111 = vmatprep.subr.mxu0 0.0
    %112 = vmatpush1.msra.mxu0 %v67
    %113 = vmatprep.subr.mxu0 0.0
    %114 = vmatpush1.msra.mxu0 %v68
    %115 = vmatprep.subr.mxu0 0.0
    %116 = vmatpush1.msra.mxu0 %v69
    %117 = vmatprep.subr.mxu0 0.0
    %118 = vmatpush1.msra.mxu0 %v70
    %119 = vmatprep.subr.mxu0 0.0
    %120 = vmatpush1.msra.mxu0 %v71
    %121 = vmatprep.subr.mxu0 0.0
    %122 = vmatpush1.msra.mxu0 %v72
    %123 = vmatprep.subr.mxu0 0.0
    %124 = vmatpush1.msra.mxu0 %v73
    %125 = vmatprep.subr.mxu0 0.0
    %126 = vmatpush1.msra.mxu0 %v74
    %127 = vmatprep.subr.mxu0 0.0
    %128 = vmatpush1.msra.mxu0 %v75
    %129 = vmatprep.subr.mxu0 0.0
    %130 = vmatpush1.msra.mxu0 %v76
    %131 = vmatprep.subr.mxu0 0.0
    %132 = vmatpush1.msra.mxu0 %v77
    %133 = vmatprep.subr.mxu0 0.0
    %134 = vmatpush1.msra.mxu0 %v78
    %135 = vmatprep.subr.mxu0 0.0
    %136 = vmatpush1.msra.mxu0 %v79
    %137 = vmatprep.subr.mxu0 0.0
    %138 = vmatpush1.msra.mxu0 %v80
    %139 = vmatprep.subr.mxu0 0.0
    %140 = vmatpush1.msra.mxu0 %v81
    %141 = vmatprep.subr.mxu0 0.0
    %142 = vmatpush1.msra.mxu0 %v82
    %143 = vmatprep.subr.mxu0 0.0
    %144 = vmatpush1.msra.mxu0 %v83
    %145 = vmatprep.subr.mxu0 0.0
    %146 = vmatpush1.msra.mxu0 0.0
    %147 = vmatprep.subr.mxu0 0.0
    %148 = vmatpush1.msra.mxu0 0.0
    %149 = vmatprep.subr.mxu0 0.0
    %150 = vmatpush1.msra.mxu0 0.0
    %151 = vmatprep.subr.mxu0 0.0
    %152 = vmatpush1.msra.mxu0 0.0
    %153 = vmatprep.subr.mxu0 0.0
    %154 = vmatpush1.msra.mxu0 0.0
    %155 = vmatprep.subr.mxu0 0.0
    %156 = vmatpush1.msra.mxu0 0.0
    %157 = vmatprep.subr.mxu0 0.0
    %158 = vmatpush1.msra.mxu0 0.0
    %159 = vmatprep.mubr.f32.mxu0 %v93
    %160 = vmatmul.mubr.f32.gmra.mrb[0].mxu0 %v57
    %v161 = vpop.f32.mrb[0].mxu0
    %v162 = vadd.f32 %v89, %v161
    %v163 = vpop.f32.mrb[0].mxu0
    %164 = vdwg.mxu0
    %vm165 = vcmask 259072
    %v166 = vsel %vm165, %v162, 0.0
    %167 = vadd.xlane.f32.xlu0 %v166
    %v168 = vpop.xlane.xlu0 %167
    %v169 = vrcp.pop 32.0
    %v170 = vmul.f32 %v168, %v169
    %v171 = vsub.f32 %v162, %v170
    %v172 = vmul.f32 %v171, %v171
    %v173 = vsel %vm165, %v172, 0.0
    %174 = vadd.xlane.f32.xlu0 %v173
    %v175 = vpop.xlane.xlu0 %174
    %v176 = vmul.f32 %v175, %v169
    %v177 = vadd.f32 %v176, 1e-05
    %v178 = vrsqrt.pop %v177
    %v179 = vmul.f32 %v171, %v178
    %v180 = vld [vmem:[%s3] sm:$0x1]
    %v182 = vlaneseq
    %v183 = vshrl.u32 %v182, 7
    %v184 = vsub.s32 0, %v183
    %v185 = vrot.slane %v180, %v184
    %v187 = vmul.f32 %v179, %v185
    %v188 = vld [vmem:[%s4] sm:$0x1]
    %v190 = vlaneseq
    %v191 = vshrl.u32 %v190, 7
    %v192 = vsub.s32 0, %v191
    %v193 = vrot.slane %v188, %v192
    %v195 = vadd.f32 %v187, %v193
    %v196 = vtanh.pop %v195
    %v197 = vld [vmem:[%s7] sm:$0xff]
    %v198 = vld [vmem:[%s7 + $0x8] sm:$0xff]
    %v199 = vld [vmem:[%s7 + $0x10] sm:$0xff]
    %v200 = vld [vmem:[%s7 + $0x18] sm:$0xff]
    %v201 = vld [vmem:[%s5] sm:$0x3]
    %v202 = vld [vmem:[%s8] sm:$0x7]
    %vm203 = vcmask 23552
    %v205 = vsel %vm203, %v201, 0
    %vm207 = vcmask 1042432
    %v209 = vsel %vm207, %v202, 0
    %211 = vmatprep.subr.mxu0 0.0
    %212 = vmatpush1.msra.mxu0 %v209
    %213 = vmatprep.subr.mxu0 0.0
    %214 = vmatpush1.msra.mxu0 0.0
    %215 = vmatprep.subr.mxu0 0.0
    %216 = vmatpush1.msra.mxu0 0.0
    %217 = vmatprep.subr.mxu0 0.0
    %218 = vmatpush1.msra.mxu0 0.0
    %219 = vmatprep.subr.mxu0 0.0
    %220 = vmatpush1.msra.mxu0 0.0
    %221 = vmatprep.subr.mxu0 0.0
    %222 = vmatpush1.msra.mxu0 0.0
    %223 = vmatprep.subr.mxu0 0.0
    %224 = vmatpush1.msra.mxu0 0.0
    %225 = vmatprep.subr.mxu0 0.0
    %226 = vmatpush1.msra.mxu0 0.0
    %227 = vmatprep.subr.mxu0 0.0
    %228 = vmatpush1.msra.mxu0 0.0
    %229 = vmatprep.subr.mxu0 0.0
    %230 = vmatpush1.msra.mxu0 0.0
    %231 = vmatprep.subr.mxu0 0.0
    %232 = vmatpush1.msra.mxu0 0.0
    %233 = vmatprep.subr.mxu0 0.0
    %234 = vmatpush1.msra.mxu0 0.0
    %235 = vmatprep.subr.mxu0 0.0
    %236 = vmatpush1.msra.mxu0 0.0
    %237 = vmatprep.subr.mxu0 0.0
    %238 = vmatpush1.msra.mxu0 0.0
    %239 = vmatprep.subr.mxu0 0.0
    %240 = vmatpush1.msra.mxu0 0.0
    %241 = vmatprep.subr.mxu0 0.0
    %242 = vmatpush1.msra.mxu0 0.0
    %243 = vmatprep.subr.mxu0 0.0
    %244 = vmatpush1.msra.mxu0 0.0
    %245 = vmatprep.subr.mxu0 0.0
    %246 = vmatpush1.msra.mxu0 0.0
    %247 = vmatprep.subr.mxu0 0.0
    %248 = vmatpush1.msra.mxu0 0.0
    %249 = vmatprep.subr.mxu0 0.0
    %250 = vmatpush1.msra.mxu0 0.0
    %251 = vmatprep.subr.mxu0 0.0
    %252 = vmatpush1.msra.mxu0 0.0
    %253 = vmatprep.subr.mxu0 0.0
    %254 = vmatpush1.msra.mxu0 0.0
    %255 = vmatprep.subr.mxu0 0.0
    %256 = vmatpush1.msra.mxu0 0.0
    %257 = vmatprep.subr.mxu0 0.0
    %258 = vmatpush1.msra.mxu0 0.0
    %259 = vmatprep.subr.mxu0 0.0
    %260 = vmatpush1.msra.mxu0 0.0
    %261 = vmatprep.subr.mxu0 0.0
    %262 = vmatpush1.msra.mxu0 0.0
    %263 = vmatprep.subr.mxu0 0.0
    %264 = vmatpush1.msra.mxu0 0.0
    %265 = vmatprep.subr.mxu0 0.0
    %266 = vmatpush1.msra.mxu0 0.0
    %267 = vmatprep.subr.mxu0 0.0
    %268 = vmatpush1.msra.mxu0 0.0
    %269 = vmatprep.subr.mxu0 0.0
    %270 = vmatpush1.msra.mxu0 0.0
    %271 = vmatprep.subr.mxu0 0.0
    %272 = vmatpush1.msra.mxu0 0.0
    %273 = vmatprep.subr.mxu0 0.0
    %274 = vmatpush1.msra.mxu0 0.0
    %275 = vmatprep.mubr.f32.mxu0 0.0
    %276 = vmatmul.mubr.f32.gmra.mrb[0].mxu0 %v205
    %v277 = vpop.f32.mrb[0].mxu0
    %v278 = vadd.f32 0.0, %v277
    %v279 = vpop.f32.mrb[0].mxu0
    %280 = vdwg.mxu0
    %vm281 = vcmask 261120
    %v283 = vsel %vm281, %v196, 0
    %285 = vmatprep.subr.mxu0 0.0
    %286 = vmatpush1.msra.mxu0 %v197
    %287 = vmatprep.subr.mxu0 0.0
    %288 = vmatpush1.msra.mxu0 %v198
    %289 = vmatprep.subr.mxu0 0.0
    %290 = vmatpush1.msra.mxu0 %v199
    %291 = vmatprep.subr.mxu0 0.0
    %292 = vmatpush1.msra.mxu0 %v200
    %293 = vmatprep.subr.mxu0 0.0
    %294 = vmatpush1.msra.mxu0 0.0
    %295 = vmatprep.subr.mxu0 0.0
    %296 = vmatpush1.msra.mxu0 0.0
    %297 = vmatprep.subr.mxu0 0.0
    %298 = vmatpush1.msra.mxu0 0.0
    %299 = vmatprep.subr.mxu0 0.0
    %300 = vmatpush1.msra.mxu0 0.0
    %301 = vmatprep.subr.mxu0 0.0
    %302 = vmatpush1.msra.mxu0 0.0
    %303 = vmatprep.subr.mxu0 0.0
    %304 = vmatpush1.msra.mxu0 0.0
    %305 = vmatprep.subr.mxu0 0.0
    %306 = vmatpush1.msra.mxu0 0.0
    %307 = vmatprep.subr.mxu0 0.0
    %308 = vmatpush1.msra.mxu0 0.0
    %309 = vmatprep.subr.mxu0 0.0
    %310 = vmatpush1.msra.mxu0 0.0
    %311 = vmatprep.subr.mxu0 0.0
    %312 = vmatpush1.msra.mxu0 0.0
    %313 = vmatprep.subr.mxu0 0.0
    %314 = vmatpush1.msra.mxu0 0.0
    %315 = vmatprep.subr.mxu0 0.0
    %316 = vmatpush1.msra.mxu0 0.0
    %317 = vmatprep.subr.mxu0 0.0
    %318 = vmatpush1.msra.mxu0 0.0
    %319 = vmatprep.subr.mxu0 0.0
    %320 = vmatpush1.msra.mxu0 0.0
    %321 = vmatprep.subr.mxu0 0.0
    %322 = vmatpush1.msra.mxu0 0.0
    %323 = vmatprep.subr.mxu0 0.0
    %324 = vmatpush1.msra.mxu0 0.0
    %325 = vmatprep.subr.mxu0 0.0
    %326 = vmatpush1.msra.mxu0 0.0
    %327 = vmatprep.subr.mxu0 0.0
    %328 = vmatpush1.msra.mxu0 0.0
    %329 = vmatprep.subr.mxu0 0.0
    %330 = vmatpush1.msra.mxu0 0.0
    %331 = vmatprep.subr.mxu0 0.0
    %332 = vmatpush1.msra.mxu0 0.0
    %333 = vmatprep.subr.mxu0 0.0
    %334 = vmatpush1.msra.mxu0 0.0
    %335 = vmatprep.subr.mxu0 0.0
    %336 = vmatpush1.msra.mxu0 0.0
    %337 = vmatprep.subr.mxu0 0.0
    %338 = vmatpush1.msra.mxu0 0.0
    %339 = vmatprep.subr.mxu0 0.0
    %340 = vmatpush1.msra.mxu0 0.0
    %341 = vmatprep.subr.mxu0 0.0
    %342 = vmatpush1.msra.mxu0 0.0
    %343 = vmatprep.subr.mxu0 0.0
    %344 = vmatpush1.msra.mxu0 0.0
    %345 = vmatprep.subr.mxu0 0.0
    %346 = vmatpush1.msra.mxu0 0.0
    %347 = vmatprep.subr.mxu0 0.0
    %348 = vmatpush1.msra.mxu0 0.0
    %349 = vmatprep.mubr.f32.mxu0 0.0
    %350 = vmatmul.mubr.f32.gmra.mrb[0].mxu0 %v283
    %v351 = vpop.f32.mrb[0].mxu0
    %v352 = vadd.f32 %v278, %v351
    %v353 = vpop.f32.mrb[0].mxu0
    %354 = vdwg.mxu0
    %v355 = vld [vmem:[%s9] sm:$0xff]
    %v356 = vld [vmem:[%s9 + $0x8] sm:$0xff]
    %v357 = vld [vmem:[%s9 + $0x10] sm:$0xff]
    %v358 = vld [vmem:[%s9 + $0x18] sm:$0xff]
    %v359 = vrot.slane %v196, 2
    %v360 = vsel %vm281, %v359, 0
    %362 = vmatprep.subr.mxu0 0.0
    %363 = vmatpush1.msra.mxu0 %v355
    %364 = vmatprep.subr.mxu0 0.0
    %365 = vmatpush1.msra.mxu0 %v356
    %366 = vmatprep.subr.mxu0 0.0
    %367 = vmatpush1.msra.mxu0 %v357
    %368 = vmatprep.subr.mxu0 0.0
    %369 = vmatpush1.msra.mxu0 %v358
    %370 = vmatprep.subr.mxu0 0.0
    %371 = vmatpush1.msra.mxu0 0.0
    %372 = vmatprep.subr.mxu0 0.0
    %373 = vmatpush1.msra.mxu0 0.0
    %374 = vmatprep.subr.mxu0 0.0
    %375 = vmatpush1.msra.mxu0 0.0
    %376 = vmatprep.subr.mxu0 0.0
    %377 = vmatpush1.msra.mxu0 0.0
    %378 = vmatprep.subr.mxu0 0.0
    %379 = vmatpush1.msra.mxu0 0.0
    %380 = vmatprep.subr.mxu0 0.0
    %381 = vmatpush1.msra.mxu0 0.0
    %382 = vmatprep.subr.mxu0 0.0
    %383 = vmatpush1.msra.mxu0 0.0
    %384 = vmatprep.subr.mxu0 0.0
    %385 = vmatpush1.msra.mxu0 0.0
    %386 = vmatprep.subr.mxu0 0.0
    %387 = vmatpush1.msra.mxu0 0.0
    %388 = vmatprep.subr.mxu0 0.0
    %389 = vmatpush1.msra.mxu0 0.0
    %390 = vmatprep.subr.mxu0 0.0
    %391 = vmatpush1.msra.mxu0 0.0
    %392 = vmatprep.subr.mxu0 0.0
    %393 = vmatpush1.msra.mxu0 0.0
    %394 = vmatprep.subr.mxu0 0.0
    %395 = vmatpush1.msra.mxu0 0.0
    %396 = vmatprep.subr.mxu0 0.0
    %397 = vmatpush1.msra.mxu0 0.0
    %398 = vmatprep.subr.mxu0 0.0
    %399 = vmatpush1.msra.mxu0 0.0
    %400 = vmatprep.subr.mxu0 0.0
    %401 = vmatpush1.msra.mxu0 0.0
    %402 = vmatprep.subr.mxu0 0.0
    %403 = vmatpush1.msra.mxu0 0.0
    %404 = vmatprep.subr.mxu0 0.0
    %405 = vmatpush1.msra.mxu0 0.0
    %406 = vmatprep.subr.mxu0 0.0
    %407 = vmatpush1.msra.mxu0 0.0
    %408 = vmatprep.subr.mxu0 0.0
    %409 = vmatpush1.msra.mxu0 0.0
    %410 = vmatprep.subr.mxu0 0.0
    %411 = vmatpush1.msra.mxu0 0.0
    %412 = vmatprep.subr.mxu0 0.0
    %413 = vmatpush1.msra.mxu0 0.0
    %414 = vmatprep.subr.mxu0 0.0
    %415 = vmatpush1.msra.mxu0 0.0
    %416 = vmatprep.subr.mxu0 0.0
    %417 = vmatpush1.msra.mxu0 0.0
    %418 = vmatprep.subr.mxu0 0.0
    %419 = vmatpush1.msra.mxu0 0.0
    %420 = vmatprep.subr.mxu0 0.0
    %421 = vmatpush1.msra.mxu0 0.0
    %422 = vmatprep.subr.mxu0 0.0
    %423 = vmatpush1.msra.mxu0 0.0
    %424 = vmatprep.subr.mxu0 0.0
    %425 = vmatpush1.msra.mxu0 0.0
    %426 = vmatprep.mubr.f32.mxu0 0.0
    %427 = vmatmul.mubr.f32.gmra.mrb[0].mxu0 %v360
    %v428 = vpop.f32.mrb[0].mxu0
    %v429 = vadd.f32 0.0, %v428
    %v430 = vpop.f32.mrb[0].mxu0
    %431 = vdwg.mxu0
    %v432 = vadd.f32 %v352, %v429
    %v433 = vld [vmem:[%s6] sm:$0x3]
    %v434 = vld [vmem:[%s10] sm:$0x7]
    %v436 = vsel %vm203, %v433, 0
    %v439 = vsel %vm207, %v434, 0
    %441 = vmatprep.subr.mxu0 0.0
    %442 = vmatpush1.msra.mxu0 %v439
    %443 = vmatprep.subr.mxu0 0.0
    %444 = vmatpush1.msra.mxu0 0.0
    %445 = vmatprep.subr.mxu0 0.0
    %446 = vmatpush1.msra.mxu0 0.0
    %447 = vmatprep.subr.mxu0 0.0
    %448 = vmatpush1.msra.mxu0 0.0
    %449 = vmatprep.subr.mxu0 0.0
    %450 = vmatpush1.msra.mxu0 0.0
    %451 = vmatprep.subr.mxu0 0.0
    %452 = vmatpush1.msra.mxu0 0.0
    %453 = vmatprep.subr.mxu0 0.0
    %454 = vmatpush1.msra.mxu0 0.0
    %455 = vmatprep.subr.mxu0 0.0
    %456 = vmatpush1.msra.mxu0 0.0
    %457 = vmatprep.subr.mxu0 0.0
    %458 = vmatpush1.msra.mxu0 0.0
    %459 = vmatprep.subr.mxu0 0.0
    %460 = vmatpush1.msra.mxu0 0.0
    %461 = vmatprep.subr.mxu0 0.0
    %462 = vmatpush1.msra.mxu0 0.0
    %463 = vmatprep.subr.mxu0 0.0
    %464 = vmatpush1.msra.mxu0 0.0
    %465 = vmatprep.subr.mxu0 0.0
    %466 = vmatpush1.msra.mxu0 0.0
    %467 = vmatprep.subr.mxu0 0.0
    %468 = vmatpush1.msra.mxu0 0.0
    %469 = vmatprep.subr.mxu0 0.0
    %470 = vmatpush1.msra.mxu0 0.0
    %471 = vmatprep.subr.mxu0 0.0
    %472 = vmatpush1.msra.mxu0 0.0
    %473 = vmatprep.subr.mxu0 0.0
    %474 = vmatpush1.msra.mxu0 0.0
    %475 = vmatprep.subr.mxu0 0.0
    %476 = vmatpush1.msra.mxu0 0.0
    %477 = vmatprep.subr.mxu0 0.0
    %478 = vmatpush1.msra.mxu0 0.0
    %479 = vmatprep.subr.mxu0 0.0
    %480 = vmatpush1.msra.mxu0 0.0
    %481 = vmatprep.subr.mxu0 0.0
    %482 = vmatpush1.msra.mxu0 0.0
    %483 = vmatprep.subr.mxu0 0.0
    %484 = vmatpush1.msra.mxu0 0.0
    %485 = vmatprep.subr.mxu0 0.0
    %486 = vmatpush1.msra.mxu0 0.0
    %487 = vmatprep.subr.mxu0 0.0
    %488 = vmatpush1.msra.mxu0 0.0
    %489 = vmatprep.subr.mxu0 0.0
    %490 = vmatpush1.msra.mxu0 0.0
    %491 = vmatprep.subr.mxu0 0.0
    %492 = vmatpush1.msra.mxu0 0.0
    %493 = vmatprep.subr.mxu0 0.0
    %494 = vmatpush1.msra.mxu0 0.0
    %495 = vmatprep.subr.mxu0 0.0
    %496 = vmatpush1.msra.mxu0 0.0
    %497 = vmatprep.subr.mxu0 0.0
    %498 = vmatpush1.msra.mxu0 0.0
    %499 = vmatprep.subr.mxu0 0.0
    %500 = vmatpush1.msra.mxu0 0.0
    %501 = vmatprep.subr.mxu0 0.0
    %502 = vmatpush1.msra.mxu0 0.0
    %503 = vmatprep.subr.mxu0 0.0
    %504 = vmatpush1.msra.mxu0 0.0
    %505 = vmatprep.mubr.f32.mxu0 0.0
    %506 = vmatmul.mubr.f32.gmra.mrb[0].mxu0 %v436
    %v507 = vpop.f32.mrb[0].mxu0
    %v508 = vadd.f32 0.0, %v507
    %v509 = vpop.f32.mrb[0].mxu0
    %510 = vdwg.mxu0
    %v511 = vadd.f32 %v432, %v508
    %v512 = vld [vmem:[%s11] sm:$0xff]
    %v513 = vld [vmem:[%s11 + $0x8] sm:$0xff]
    %v514 = vld [vmem:[%s11 + $0x10] sm:$0xff]
    %v515 = vld [vmem:[%s11 + $0x18] sm:$0xff]
    %v516 = vrot.slane %v196, 4
    %v517 = vsel %vm281, %v516, 0
    %519 = vmatprep.subr.mxu0 0.0
    %520 = vmatpush1.msra.mxu0 %v512
    %521 = vmatprep.subr.mxu0 0.0
    %522 = vmatpush1.msra.mxu0 %v513
    %523 = vmatprep.subr.mxu0 0.0
    %524 = vmatpush1.msra.mxu0 %v514
    %525 = vmatprep.subr.mxu0 0.0
    %526 = vmatpush1.msra.mxu0 %v515
    %527 = vmatprep.subr.mxu0 0.0
    %528 = vmatpush1.msra.mxu0 0.0
    %529 = vmatprep.subr.mxu0 0.0
    %530 = vmatpush1.msra.mxu0 0.0
    %531 = vmatprep.subr.mxu0 0.0
    %532 = vmatpush1.msra.mxu0 0.0
    %533 = vmatprep.subr.mxu0 0.0
    %534 = vmatpush1.msra.mxu0 0.0
    %535 = vmatprep.subr.mxu0 0.0
    %536 = vmatpush1.msra.mxu0 0.0
    %537 = vmatprep.subr.mxu0 0.0
    %538 = vmatpush1.msra.mxu0 0.0
    %539 = vmatprep.subr.mxu0 0.0
    %540 = vmatpush1.msra.mxu0 0.0
    %541 = vmatprep.subr.mxu0 0.0
    %542 = vmatpush1.msra.mxu0 0.0
    %543 = vmatprep.subr.mxu0 0.0
    %544 = vmatpush1.msra.mxu0 0.0
    %545 = vmatprep.subr.mxu0 0.0
    %546 = vmatpush1.msra.mxu0 0.0
    %547 = vmatprep.subr.mxu0 0.0
    %548 = vmatpush1.msra.mxu0 0.0
    %549 = vmatprep.subr.mxu0 0.0
    %550 = vmatpush1.msra.mxu0 0.0
    %551 = vmatprep.subr.mxu0 0.0
    %552 = vmatpush1.msra.mxu0 0.0
    %553 = vmatprep.subr.mxu0 0.0
    %554 = vmatpush1.msra.mxu0 0.0
    %555 = vmatprep.subr.mxu0 0.0
    %556 = vmatpush1.msra.mxu0 0.0
    %557 = vmatprep.subr.mxu0 0.0
    %558 = vmatpush1.msra.mxu0 0.0
    %559 = vmatprep.subr.mxu0 0.0
    %560 = vmatpush1.msra.mxu0 0.0
    %561 = vmatprep.subr.mxu0 0.0
    %562 = vmatpush1.msra.mxu0 0.0
    %563 = vmatprep.subr.mxu0 0.0
    %564 = vmatpush1.msra.mxu0 0.0
    %565 = vmatprep.subr.mxu0 0.0
    %566 = vmatpush1.msra.mxu0 0.0
    %567 = vmatprep.subr.mxu0 0.0
    %568 = vmatpush1.msra.mxu0 0.0
    %569 = vmatprep.subr.mxu0 0.0
    %570 = vmatpush1.msra.mxu0 0.0
    %571 = vmatprep.subr.mxu0 0.0
    %572 = vmatpush1.msra.mxu0 0.0
    %573 = vmatprep.subr.mxu0 0.0
    %574 = vmatpush1.msra.mxu0 0.0
    %575 = vmatprep.subr.mxu0 0.0
    %576 = vmatpush1.msra.mxu0 0.0
    %577 = vmatprep.subr.mxu0 0.0
    %578 = vmatpush1.msra.mxu0 0.0
    %579 = vmatprep.subr.mxu0 0.0
    %580 = vmatpush1.msra.mxu0 0.0
    %581 = vmatprep.subr.mxu0 0.0
    %582 = vmatpush1.msra.mxu0 0.0
    %583 = vmatprep.mubr.f32.mxu0 0.0
    %584 = vmatmul.mubr.f32.gmra.mrb[0].mxu0 %v517
    %v585 = vpop.f32.mrb[0].mxu0
    %v586 = vadd.f32 0.0, %v585
    %v587 = vpop.f32.mrb[0].mxu0
    %588 = vdwg.mxu0
    %v589 = vadd.f32 %v511, %v586
    %v590 = vld [vmem:[%s12] sm:$0x1]
    %v592 = vlaneseq
    %v593 = vshrl.u32 %v592, 7
    %v594 = vsub.s32 0, %v593
    %v595 = vrot.slane %v590, %v594
    %v597 = vadd.f32 %v589, %v595
    %v598 = vmax.f32 %v597, 0.0
    %v599 = vld [vmem:[%s13] sm:$0xff]
    %v600 = vld [vmem:[%s13 + $0x8] sm:$0xff]
    %v601 = vld [vmem:[%s13 + $0x10] sm:$0xf]
    %v602 = vld [vmem:[%s14] sm:$0x1]
    %v604 = vlaneseq
    %v605 = vshrl.u32 %v604, 7
    %v606 = vsub.s32 0, %v605
    %v607 = vrot.slane %v602, %v606
    %vm609 = vcmask 162816
    %v611 = vsel %vm609, %v598, 0
    %vm613 = vcmask 1043456
    %v615 = vsel %vm613, %v601, 0
    %617 = vmatprep.subr.mxu0 0.0
    %618 = vmatpush1.msra.mxu0 %v599
    %619 = vmatprep.subr.mxu0 0.0
    %620 = vmatpush1.msra.mxu0 %v600
    %621 = vmatprep.subr.mxu0 0.0
    %622 = vmatpush1.msra.mxu0 %v615
    %623 = vmatprep.subr.mxu0 0.0
    %624 = vmatpush1.msra.mxu0 0.0
    %625 = vmatprep.subr.mxu0 0.0
    %626 = vmatpush1.msra.mxu0 0.0
    %627 = vmatprep.subr.mxu0 0.0
    %628 = vmatpush1.msra.mxu0 0.0
    %629 = vmatprep.subr.mxu0 0.0
    %630 = vmatpush1.msra.mxu0 0.0
    %631 = vmatprep.subr.mxu0 0.0
    %632 = vmatpush1.msra.mxu0 0.0
    %633 = vmatprep.subr.mxu0 0.0
    %634 = vmatpush1.msra.mxu0 0.0
    %635 = vmatprep.subr.mxu0 0.0
    %636 = vmatpush1.msra.mxu0 0.0
    %637 = vmatprep.subr.mxu0 0.0
    %638 = vmatpush1.msra.mxu0 0.0
    %639 = vmatprep.subr.mxu0 0.0
    %640 = vmatpush1.msra.mxu0 0.0
    %641 = vmatprep.subr.mxu0 0.0
    %642 = vmatpush1.msra.mxu0 0.0
    %643 = vmatprep.subr.mxu0 0.0
    %644 = vmatpush1.msra.mxu0 0.0
    %645 = vmatprep.subr.mxu0 0.0
    %646 = vmatpush1.msra.mxu0 0.0
    %647 = vmatprep.subr.mxu0 0.0
    %648 = vmatpush1.msra.mxu0 0.0
    %649 = vmatprep.subr.mxu0 0.0
    %650 = vmatpush1.msra.mxu0 0.0
    %651 = vmatprep.subr.mxu0 0.0
    %652 = vmatpush1.msra.mxu0 0.0
    %653 = vmatprep.subr.mxu0 0.0
    %654 = vmatpush1.msra.mxu0 0.0
    %655 = vmatprep.subr.mxu0 0.0
    %656 = vmatpush1.msra.mxu0 0.0
    %657 = vmatprep.subr.mxu0 0.0
    %658 = vmatpush1.msra.mxu0 0.0
    %659 = vmatprep.subr.mxu0 0.0
    %660 = vmatpush1.msra.mxu0 0.0
    %661 = vmatprep.subr.mxu0 0.0
    %662 = vmatpush1.msra.mxu0 0.0
    %663 = vmatprep.subr.mxu0 0.0
    %664 = vmatpush1.msra.mxu0 0.0
    %665 = vmatprep.subr.mxu0 0.0
    %666 = vmatpush1.msra.mxu0 0.0
    %667 = vmatprep.subr.mxu0 0.0
    %668 = vmatpush1.msra.mxu0 0.0
    %669 = vmatprep.subr.mxu0 0.0
    %670 = vmatpush1.msra.mxu0 0.0
    %671 = vmatprep.subr.mxu0 0.0
    %672 = vmatpush1.msra.mxu0 0.0
    %673 = vmatprep.subr.mxu0 0.0
    %674 = vmatpush1.msra.mxu0 0.0
    %675 = vmatprep.subr.mxu0 0.0
    %676 = vmatpush1.msra.mxu0 0.0
    %677 = vmatprep.subr.mxu0 0.0
    %678 = vmatpush1.msra.mxu0 0.0
    %679 = vmatprep.subr.mxu0 0.0
    %680 = vmatpush1.msra.mxu0 0.0
    %681 = vmatprep.mubr.f32.mxu0 0.0
    %682 = vmatmul.mubr.f32.gmra.mrb[0].mxu0 %v611
    %v683 = vpop.f32.mrb[0].mxu0
    %v684 = vadd.f32 %v607, %v683
    %v685 = vpop.f32.mrb[0].mxu0
    %686 = vdwg.mxu0
    %v687 = vmax.f32 %v684, 0.0
    %v688 = vld [vmem:[%s15] sm:$0xff]
    %v689 = vld [vmem:[%s15 + $0x8] sm:$0xff]
    %v690 = vld [vmem:[%s15 + $0x10] sm:$0xf]
    %v691 = vld [vmem:[%s16] sm:$0x1]
    %v693 = vlaneseq
    %v694 = vshrl.u32 %v693, 7
    %v695 = vsub.s32 0, %v694
    %v696 = vrot.slane %v691, %v695
    %v699 = vsel %vm609, %v687, 0
    %v702 = vsel %vm613, %v690, 0
    %704 = vmatprep.subr.mxu0 0.0
    %705 = vmatpush1.msra.mxu0 %v688
    %706 = vmatprep.subr.mxu0 0.0
    %707 = vmatpush1.msra.mxu0 %v689
    %708 = vmatprep.subr.mxu0 0.0
    %709 = vmatpush1.msra.mxu0 %v702
    %710 = vmatprep.subr.mxu0 0.0
    %711 = vmatpush1.msra.mxu0 0.0
    %712 = vmatprep.subr.mxu0 0.0
    %713 = vmatpush1.msra.mxu0 0.0
    %714 = vmatprep.subr.mxu0 0.0
    %715 = vmatpush1.msra.mxu0 0.0
    %716 = vmatprep.subr.mxu0 0.0
    %717 = vmatpush1.msra.mxu0 0.0
    %718 = vmatprep.subr.mxu0 0.0
    %719 = vmatpush1.msra.mxu0 0.0
    %720 = vmatprep.subr.mxu0 0.0
    %721 = vmatpush1.msra.mxu0 0.0
    %722 = vmatprep.subr.mxu0 0.0
    %723 = vmatpush1.msra.mxu0 0.0
    %724 = vmatprep.subr.mxu0 0.0
    %725 = vmatpush1.msra.mxu0 0.0
    %726 = vmatprep.subr.mxu0 0.0
    %727 = vmatpush1.msra.mxu0 0.0
    %728 = vmatprep.subr.mxu0 0.0
    %729 = vmatpush1.msra.mxu0 0.0
    %730 = vmatprep.subr.mxu0 0.0
    %731 = vmatpush1.msra.mxu0 0.0
    %732 = vmatprep.subr.mxu0 0.0
    %733 = vmatpush1.msra.mxu0 0.0
    %734 = vmatprep.subr.mxu0 0.0
    %735 = vmatpush1.msra.mxu0 0.0
    %736 = vmatprep.subr.mxu0 0.0
    %737 = vmatpush1.msra.mxu0 0.0
    %738 = vmatprep.subr.mxu0 0.0
    %739 = vmatpush1.msra.mxu0 0.0
    %740 = vmatprep.subr.mxu0 0.0
    %741 = vmatpush1.msra.mxu0 0.0
    %742 = vmatprep.subr.mxu0 0.0
    %743 = vmatpush1.msra.mxu0 0.0
    %744 = vmatprep.subr.mxu0 0.0
    %745 = vmatpush1.msra.mxu0 0.0
    %746 = vmatprep.subr.mxu0 0.0
    %747 = vmatpush1.msra.mxu0 0.0
    %748 = vmatprep.subr.mxu0 0.0
    %749 = vmatpush1.msra.mxu0 0.0
    %750 = vmatprep.subr.mxu0 0.0
    %751 = vmatpush1.msra.mxu0 0.0
    %752 = vmatprep.subr.mxu0 0.0
    %753 = vmatpush1.msra.mxu0 0.0
    %754 = vmatprep.subr.mxu0 0.0
    %755 = vmatpush1.msra.mxu0 0.0
    %756 = vmatprep.subr.mxu0 0.0
    %757 = vmatpush1.msra.mxu0 0.0
    %758 = vmatprep.subr.mxu0 0.0
    %759 = vmatpush1.msra.mxu0 0.0
    %760 = vmatprep.subr.mxu0 0.0
    %761 = vmatpush1.msra.mxu0 0.0
    %762 = vmatprep.subr.mxu0 0.0
    %763 = vmatpush1.msra.mxu0 0.0
    %764 = vmatprep.subr.mxu0 0.0
    %765 = vmatpush1.msra.mxu0 0.0
    %766 = vmatprep.subr.mxu0 0.0
    %767 = vmatpush1.msra.mxu0 0.0
    %768 = vmatprep.mubr.f32.mxu0 0.0
    %769 = vmatmul.mubr.f32.gmra.mrb[0].mxu0 %v699
    %v770 = vpop.f32.mrb[0].mxu0
    %v771 = vadd.f32 %v696, %v770
    %v772 = vpop.f32.mrb[0].mxu0
    %773 = vdwg.mxu0
    %vm774 = vcmask 123904
    %775 = vst.msk [vmem:[#allocation2] sm:$0x3] %vm774, %v771
    // Predicated region
    $region70: #{domain_specific_visual_forward.5} parent=1 // pred_check
      _
    $region71: #{domain_specific_visual_forward.5} parent=1 // pred_check_branch
      %777 = sbr.rel (0) target = $region73
    $region72: #{domain_specific_visual_forward.5} parent=1 // pred_region
      %s779 = ssub.s32 32, 32
      %780 = vsyncadd [#allocation3], %s779
      %s782 = sshll.u32 [#allocation2], 4
      %s783 = int_to_ptr.vmem [resolvable:$true] %s782
      %785 = dma.vmem_to_hbm [thread:$0]  %s783, 32, %s17, [#allocation3]
    $region73: #{domain_specific_visual_forward.5} parent=1 // pred_fallthru
      _
    // Predicated region
    $region74: #{domain_specific_visual_forward.5} parent=1 // pred_check
      _
    $region75: #{domain_specific_visual_forward.5} parent=1 // pred_check_branch
      %787 = sbr.rel (0) target = $region77
    $region76: #{domain_specific_visual_forward.5} parent=1 // pred_region
      %788 = dma.done [#allocation3], 32
    $region77: #{domain_specific_visual_forward.5} parent=1 // pred_fallthru
      _
    %789 = vsyncpa [#allocation3], 1

</llo_original>
